<compile_context>
chip_gen: v6e
topology: v6e:2x2x1
jax: 0.10.0
libtpu: 0.0.40
codegen_flags: <defaults>
</compile_context>

<pallas_src>
import math
import jax
import jax.numpy as jnp
from jax import lax
from jax.experimental import pallas as pl
from jax.experimental.pallas import tpu as pltpu


def _round_up(x, m):
    return ((x + m - 1) // m) * m


def _pe_gather_kernel(idx_ref, pe_ref, o_ref):
    """Row gather via one-hot MXU matmul: o[r, :] = pe[idx[r], :].

    idx_ref: (TM, 1)    int32   VMEM  (row indices for this tile)
    pe_ref:  (Vpad, D)  float32 VMEM  (full padded PE table, resident)
    o_ref:   (TM, D)    float32 VMEM
    """
    tm = idx_ref.shape[0]
    v = pe_ref.shape[0]
    idx = idx_ref[...]                                    # (TM, 1)
    iota = lax.broadcasted_iota(jnp.int32, (tm, v), 1)    # (TM, Vpad), V -> lanes
    onehot = (idx == iota).astype(jnp.float32)            # (TM, Vpad)
    # Single MXU push per grid step: (TM, Vpad) @ (Vpad, D) -> (TM, D).
    # HIGHEST precision keeps the fp32 gather exact (one-hot selects rows
    # verbatim; no reduced-precision MXU splitting of the table values).
    o_ref[...] = jnp.dot(
        onehot, pe_ref[...],
        preferred_element_type=jnp.float32,
        precision=lax.Precision.HIGHEST,
    )


def _choose_block_rows(n_rows, v_pad, d, *, target=512, step_vmem_budget=8 << 20):
    """Row-tile size: big enough to amortize the ~0.35us/step pipeline
    overhead (target 512 rows -> 256 KiB output tile at D=128), capped so the
    per-step VMEM footprint (one-hot + double-buffered output + index blocks)
    fits the budget, kept a multiple of 8 (sublanes), and yielding >= 2 grid
    steps when there is enough work (v7x has 2 TensorCores)."""
    bytes_per_row = 4 * (v_pad + 2 * d + 2)       # onehot + 2x out + 2x idx
    cap = max(8, (step_vmem_budget // bytes_per_row) // 8 * 8)
    tm = min(target, cap)
    if n_rows < 2 * tm:
        # Not enough rows for two full tiles: split the work in half instead
        # so both TensorCores (v7x) still get a step each.
        tm = max(8, _round_up(-(-n_rows // 2), 8))
    return int(tm)


def positional_encoding_forward(pos, pe, *, block_rows=None):
    """Pallas implementation of PositionalEncoding.forward.

    pos: (B, S, 3) integer indices into the PE table
    pe:  (max_len, d_model) float32 sinusoidal table
    returns (gp_embds, lp_embds, pp_embds), each (B, S, d_model)

    On v5e you may pass block_rows=128..256 (K=128 already fills its MXU and
    its scoped VMEM default is 16 MiB).
    """
    B, S, _ = pos.shape
    V, D = pe.shape
    idx = pos.astype(jnp.int32)

    # Fuse the three gathers: rows [0:BS) use column 0, [BS:2BS) column 1,
    # [2BS:3BS) column 2 of `pos`.
    n = 3 * B * S
    flat_idx = jnp.transpose(idx, (2, 0, 1)).reshape(n, 1)

    # Pad the vocab axis to a multiple of 128 ONLY (lane-aligned compare, and
    # K=128 exactly fills v5e's MXU). Padded rows are never selected by any
    # valid index.
    v_pad = _round_up(V, 128)
    pe_pad = jnp.pad(pe, ((0, v_pad - V), (0, 0))) if v_pad != V else pe

    tm = block_rows if block_rows is not None else _choose_block_rows(n, v_pad, D)
    n_pad = _round_up(n, tm)
    if n_pad != n:
        flat_idx = jnp.pad(flat_idx, ((0, n_pad - n), (0, 0)))  # pad rows hit pe[0]

    # Explicit scoped-VMEM limit: resident table (x2 to also cover the
    # double-buffered fallback) + per-step tiles (one-hot + 2x output +
    # 2x index) + headroom.  Keeps big tiles legal on v5e (16 MiB default)
    # and within v7x's 64 MiB physical VMEM.
    table_bytes = v_pad * D * 4
    step_bytes = tm * (v_pad + 2 * D + 2) * 4
    vmem_limit = int(min(64 << 20,
                         max(16 << 20, 2 * table_bytes + 2 * step_bytes + (2 << 20))))

    cost = pl.CostEstimate(
        flops=2 * n_pad * v_pad * D,
        transcendentals=0,
        bytes_accessed=n_pad * 4 + v_pad * D * 4 + n_pad * D * 4,
    )

    def call(table_spec):
        return pl.pallas_call(
            _pe_gather_kernel,
            out_shape=jax.ShapeDtypeStruct((n_pad, D), jnp.float32),
            grid=(n_pad // tm,),
            in_specs=[
                # Merged index stream. (TM, 1) is lane-sparse but tiny; per
                # the review we keep it rather than widening it.
                pl.BlockSpec((tm, 1), lambda i: (i, 0)),
                table_spec,                               # PE table (resident)
            ],
            out_specs=pl.BlockSpec((tm, D), lambda i: (i, 0)),
            compiler_params=pltpu.CompilerParams(
                dimension_semantics=("parallel",),        # sharded across TCs on v7x
                vmem_limit_bytes=vmem_limit,
            ),
            cost_estimate=cost,
        )(flat_idx, pe_pad)

    try:
        # Single-buffer the constant-index table: halves its VMEM footprint.
        out_flat = call(pl.BlockSpec((v_pad, D), lambda i: (0, 0),
                                     pipeline_mode=pl.Buffered(1)))
    except Exception:
        # Fallback for Pallas versions without pipeline_mode support:
        # default (double-buffered) resident table.
        out_flat = call(pl.BlockSpec((v_pad, D), lambda i: (0, 0)))

    bs = B * S
    gp = out_flat[0 * bs:1 * bs].reshape(B, S, D)
    lp = out_flat[1 * bs:2 * bs].reshape(B, S, D)
    pp = out_flat[2 * bs:3 * bs].reshape(B, S, D)
    return gp, lp, pp


def make_pe_table(d_model, max_len):
    """Mirror of the PyTorch __init__ buffer construction."""
    position = jnp.arange(0.0, max_len, dtype=jnp.float32)[:, None]
    div_term = jnp.exp(
        jnp.arange(0.0, d_model, 2, dtype=jnp.float32) * -(math.log(10000.0) / d_model)
    )
    pe = jnp.zeros((max_len, d_model), dtype=jnp.float32)
    pe = pe.at[:, 0::2].set(jnp.sin(position * div_term))
    pe = pe.at[:, 1::2].set(jnp.cos(position * div_term))
    return pe


def _reference(pos, pe):
    idx = pos.astype(jnp.int32)
    return pe[idx[:, :, 0]], pe[idx[:, :, 1]], pe[idx[:, :, 2]]


if __name__ == "__main__":
    key = jax.random.PRNGKey(0)
    B, S = 2, 8
    d_model = 128     # lane-dense output (multiple of 128)
    max_len = 64      # vocab axis padded to 128 inside the wrapper

    pe = make_pe_table(d_model, max_len)

    k1, k2, k3 = jax.random.split(key, 3)
    pos = jnp.stack(
        [
            jax.random.randint(k1, (B, S), 0, max_len),
            jax.random.randint(k2, (B, S), 0, max_len),
            jax.random.randint(k3, (B, S), 0, max_len),
        ],
        axis=-1,
    ).astype(jnp.int32)                                   # (B, S, 3)

    gp, lp, pp = positional_encoding_forward(pos, pe)
    gp, lp, pp = jax.block_until_ready((gp, lp, pp))

    rgp, rlp, rpp = _reference(pos, pe)
    assert gp.shape == (B, S, d_model)
    assert lp.shape == (B, S, d_model)
    assert pp.shape == (B, S, d_model)
    assert jnp.allclose(gp, rgp, atol=1e-5, rtol=1e-5), "gp mismatch vs reference"
    assert jnp.allclose(lp, rlp, atol=1e-5, rtol=1e-5), "lp mismatch vs reference"
    assert jnp.allclose(pp, rpp, atol=1e-5, rtol=1e-5), "pp mismatch vs reference"

    print("KERNEL_OK")
</pallas_src>

<mosaic_0001>
module attributes {stable_mosaic.version = 11 : i64} {
  func.func @_pe_gather_kernel(%arg0: i32, %arg1: memref<24x1xi32, #tpu.memory_space<vmem>>, %arg2: memref<128x128xf32, #tpu.memory_space<vmem>>, %arg3: memref<24x128xf32, #tpu.memory_space<vmem>>) attributes {dimension_semantics = [#tpu.dimension_semantics<parallel>], iteration_bounds = array<i64: 2>, scalar_prefetch = 0 : i64, scratch_operands = 0 : i64, tpu.core_type = #tpu.core_type<tc>, window_params = [{transform_indices = @transform_0, window_bounds = array<i64: 24, 1>}, {pipeline_mode = #tpu.pipeline_mode<synchronous>, transform_indices = @transform_1, window_bounds = array<i64: 128, 128>}, {transform_indices = @transform_2, window_bounds = array<i64: 24, 128>}]} {
    %c0 = arith.constant 0 : index
    %c0_0 = arith.constant 0 : index
    %0 = vector.load %arg1[%c0, %c0_0] : memref<24x1xi32, #tpu.memory_space<vmem>>, vector<24x1xi32>
    %1 = tpu.iota {dimensions = array<i32: 1>} : vector<24x128xi32>
    %2 = vector.broadcast %0 : vector<24x1xi32> to vector<24x128xi32>
    %3 = arith.cmpi eq, %2, %1 : vector<24x128xi32>
    %4 = arith.extui %3 : vector<24x128xi1> to vector<24x128xi32>
    %5 = arith.sitofp %4 : vector<24x128xi32> to vector<24x128xf32>
    %c0_1 = arith.constant 0 : index
    %c0_2 = arith.constant 0 : index
    %6 = vector.load %arg2[%c0_1, %c0_2] : memref<128x128xf32, #tpu.memory_space<vmem>>, vector<128x128xf32>
    %cst = arith.constant dense<0.000000e+00> : vector<24x128xf32>
    %7 = tpu.matmul %5, %6, %cst {dimension_numbers = #tpu.dot_dimension_numbers<[1], [0], [0], [1], [0, 0, 1, 1], [], []>, precision = #tpu.contract_precision<fp32>} : vector<24x128xf32>, vector<128x128xf32>, vector<24x128xf32> -> vector<24x128xf32>
    %c0_3 = arith.constant 0 : index
    %c0_4 = arith.constant 0 : index
    %8 = vector.load %arg3[%c0_3, %c0_4] : memref<24x128xf32, #tpu.memory_space<vmem>>, vector<24x128xf32>
    tpu.vector_store %arg3[%c0_3, %c0_4], %7 {strides = array<i32>} : memref<24x128xf32, #tpu.memory_space<vmem>>, vector<24x128xf32>,
    return
  }
  func.func @transform_0(%arg0: i32) -> (i32, i32) {
    %c0_i32 = arith.constant 0 : i32
    %c0_i32_0 = arith.constant 0 : i32
    return %arg0, %c0_i32 : i32, i32
  }
  func.func @transform_1(%arg0: i32) -> (i32, i32) {
    %c0_i32 = arith.constant 0 : i32
    %c0_i32_0 = arith.constant 0 : i32
    %c0_i32_1 = arith.constant 0 : i32
    return %c0_i32, %c0_i32_0 : i32, i32
  }
  func.func @transform_2(%arg0: i32) -> (i32, i32) {
    %c0_i32 = arith.constant 0 : i32
    %c0_i32_0 = arith.constant 0 : i32
    return %arg0, %c0_i32 : i32, i32
  }
}

module attributes {stable_mosaic.version = 11 : i64} {
  func.func @_pe_gather_kernel(%arg0: i32, %arg1: memref<24x1xi32, #tpu.memory_space<vmem>>, %arg2: memref<128x128xf32, #tpu.memory_space<vmem>>, %arg3: memref<24x128xf32, #tpu.memory_space<vmem>>) attributes {dimension_semantics = [#tpu.dimension_semantics<parallel>], iteration_bounds = array<i64: 2>, scalar_prefetch = 0 : i64, scratch_operands = 0 : i64, tpu.core_type = #tpu.core_type<tc>, window_params = [{transform_indices = @transform_0, window_bounds = array<i64: 24, 1>}, {pipeline_mode = #tpu.pipeline_mode<synchronous>, transform_indices = @transform_1, window_bounds = array<i64: 128, 128>}, {transform_indices = @transform_2, window_bounds = array<i64: 24, 128>}]} {
    %c0 = arith.constant 0 : index
    %c0_0 = arith.constant 0 : index
    %0 = vector.load %arg1[%c0, %c0_0] : memref<24x1xi32, #tpu.memory_space<vmem>>, vector<24x1xi32>
    %1 = tpu.iota {dimensions = array<i32: 1>} : vector<24x128xi32>
    %2 = vector.broadcast %0 : vector<24x1xi32> to vector<24x128xi32>
    %3 = arith.cmpi eq, %2, %1 : vector<24x128xi32>
    %4 = arith.extui %3 : vector<24x128xi1> to vector<24x128xi32>
    %5 = arith.sitofp %4 : vector<24x128xi32> to vector<24x128xf32>
    %c0_1 = arith.constant 0 : index
    %c0_2 = arith.constant 0 : index
    %6 = vector.load %arg2[%c0_1, %c0_2] : memref<128x128xf32, #tpu.memory_space<vmem>>, vector<128x128xf32>
    %cst = arith.constant dense<0.000000e+00> : vector<24x128xf32>
    %7 = tpu.matmul %5, %6, %cst {dimension_numbers = #tpu.dot_dimension_numbers<[1], [0], [0], [1], [0, 0, 1, 1], [], []>, precision = #tpu.contract_precision<fp32>} : vector<24x128xf32>, vector<128x128xf32>, vector<24x128xf32> -> vector<24x128xf32>
    %c0_3 = arith.constant 0 : index
    %c0_4 = arith.constant 0 : index
    %8 = vector.load %arg3[%c0_3, %c0_4] : memref<24x128xf32, #tpu.memory_space<vmem>>, vector<24x128xf32>
    tpu.vector_store %arg3[%c0_3, %c0_4], %7 {strides = array<i32>} : memref<24x128xf32, #tpu.memory_space<vmem>>, vector<24x128xf32>,
    return
  }
  func.func @transform_0(%arg0: i32) -> (i32, i32) {
    %c0_i32 = arith.constant 0 : i32
    %c0_i32_0 = arith.constant 0 : i32
    return %arg0, %c0_i32 : i32, i32
  }
  func.func @transform_1(%arg0: i32) -> (i32, i32) {
    %c0_i32 = arith.constant 0 : i32
    %c0_i32_0 = arith.constant 0 : i32
    %c0_i32_1 = arith.constant 0 : i32
    return %c0_i32, %c0_i32_0 : i32, i32
  }
  func.func @transform_2(%arg0: i32) -> (i32, i32) {
    %c0_i32 = arith.constant 0 : i32
    %c0_i32_0 = arith.constant 0 : i32
    return %arg0, %c0_i32 : i32, i32
  }
}

</mosaic_0001>

<llo_original>
// kernel: tpu_custom_call.1
$region0: #{tpu_custom_call.1}
  #allocation0 [shape = 'u32[]', space=smem, size = 0x4, offset = 0x4, fixed_abs, tag = 'smem constant byte address 0x4 - core index']
  #allocation1 [shape = 'u32[144,128]{1,0:T(1,128)}', space=vmem, size = 0x12000, scoped, tag = 'internal scratch']
  %s0 = inlined_call_operand.vmem [shape: s32[48,1], index: 0, kind: input, shape index: {}]
  %s1 = inlined_call_operand.hbm [shape: f32[128,128], index: 1, kind: input, shape index: {}]
  %s2 = inlined_call_operand.hbm [shape: f32[48,128], index: 2, kind: output, shape index: {}]
  %s3 = sld [smem:[#allocation0]]
  $region45: #{tpu_custom_call.1} parent=0
    _
  %s5 = ssub.s32 1, %s3
  %s6 = scalar_select 0, %s5, %s3
  $region1: #{tpu_custom_call.1} parent=0
    #allocation2 [shape = 'u8[65536]{0}', space=vmem, size = 0x10000, scoped, tag = 'input window, operand 1, single buffered']
    #allocation3 [shape = 's32[2]{0}', space=sflag, size = 0x8, scoped, tag = 'scoped memory for tpu_custom_call.1']
    #allocation4 [shape = 's32[2]{0}', space=sflag, size = 0x8, scoped, tag = 'scoped memory for tpu_custom_call.1']
    #allocation5 [shape = 'u8[24576]{0}', space=vmem, size = 0x6000, scoped, tag = 'output window, operand 0']
    %7 = vsyncpa [#allocation3], 0
    %8 = vsyncpa [#allocation4], 0
    %s9 = scalar_lea.sflag [#allocation4], 1
    %10 = vsyncpa %s9, 0
    loop: start=0, step=1, limit=4
    $region2: #{tpu_custom_call.1} parent=1 // loop_pre_header
      _
    $region3: #{tpu_custom_call.1} parent=1 // loop_header
      %s12 = sphi 0, %s16
      %p13 = scmp.ge.s32.totalorder %s12, 4
      %s22 = sphi 0, %s24
      %s25 = sphi 0, %s22
      %s26 = sphi 0, %s25
      %s42 = sphi 0, %s26
      %s46 = sphi 0, %s46
      %s48 = sphi 0, %s46
      %s49 = sphi 0, %s48
      %s63 = sphi 0, %s49
      %s69 = sphi 0, %s71
      %s72 = sphi 0, %s69
      %s73 = sphi 0, %s72
      %s89 = sphi 0, %s73
    $region4: #{tpu_custom_call.1} parent=1 // loop_header_branch
      %15 = sbr.rel (%p13) target = $region8
    $region5: #{tpu_custom_call.1} parent=1 // loop_body
      %s17 = ssub.s32 %s12, 1
      %s18 = ssub.s32 %s12, 2
      %s19 = sadd.s32 %s12, 1
      %s20 = ssub.s32 %s12, %s19
      %p21 = scmp.eq.s32.totalorder %s20, 0
      %s23 = sadd.s32 %s22, 1
      %s24 = scalar_select %p21, %s22, %s23
      %p27 = pneg %p21
      %p28 = scmp.eq.s32.totalorder %s12, 1
      %p29 = por %p27, %p28
      %p30 = scmp.ne.s32.totalorder %s22, %s25
      %p31 = scmp.eq.s32.totalorder %s12, 0
      %p32 = por %p30, %p31
      %p33 = scmp.ne.s32.totalorder %s22, %s25
      %p34 = scmp.eq.s32.totalorder %s17, 1
      %p35 = por %p33, %p34
      %p36 = scmp.ne.s32.totalorder %s25, %s26
      %p37 = scmp.eq.s32.totalorder %s17, 0
      %p38 = por %p36, %p37
      %p39 = scmp.ne.s32.totalorder %s25, %s26
      %p40 = scmp.eq.s32.totalorder %s18, 1
      %p41 = por %p39, %p40
      %p43 = scmp.ne.s32.totalorder %s26, %s42
      %p44 = scmp.eq.s32.totalorder %s18, 0
      %p45 = por %p43, %p44
      %s47 = sadd.s32 %s46, 1
      %p50 = scmp.eq.s32.totalorder %s12, 1
      %p51 = scmp.ne.s32.totalorder %s46, %s48
      %p52 = scmp.eq.s32.totalorder %s12, 0
      %p53 = por %p51, %p52
      %p54 = scmp.ne.s32.totalorder %s46, %s48
      %p55 = scmp.eq.s32.totalorder %s17, 1
      %p56 = por %p54, %p55
      %p57 = scmp.ne.s32.totalorder %s48, %s49
      %p58 = scmp.eq.s32.totalorder %s17, 0
      %p59 = por %p57, %p58
      %p60 = scmp.ne.s32.totalorder %s48, %s49
      %p61 = scmp.eq.s32.totalorder %s18, 1
      %p62 = por %p60, %p61
      %p64 = scmp.ne.s32.totalorder %s49, %s63
      %p65 = scmp.eq.s32.totalorder %s18, 0
      %p66 = por %p64, %p65
      %s67 = ssub.s32 %s12, %s19
      %p68 = scmp.eq.s32.totalorder %s67, 0
      %s70 = sadd.s32 %s69, 1
      %s71 = scalar_select %p68, %s69, %s70
      %p74 = pneg %p68
      %p75 = scmp.eq.s32.totalorder %s12, 1
      %p76 = por %p74, %p75
      %p77 = scmp.ne.s32.totalorder %s69, %s72
      %p78 = scmp.eq.s32.totalorder %s12, 0
      %p79 = por %p77, %p78
      %p80 = scmp.ne.s32.totalorder %s69, %s72
      %p81 = scmp.eq.s32.totalorder %s17, 1
      %p82 = por %p80, %p81
      %p83 = scmp.ne.s32.totalorder %s72, %s73
      %p84 = scmp.eq.s32.totalorder %s17, 0
      %p85 = por %p83, %p84
      %p86 = scmp.ne.s32.totalorder %s72, %s73
      %p87 = scmp.eq.s32.totalorder %s18, 1
      %p88 = por %p86, %p87
      %p90 = scmp.ne.s32.totalorder %s73, %s89
      %p91 = scmp.eq.s32.totalorder %s18, 0
      %p92 = por %p90, %p91
      %p93 = scmp.le.s32.totalorder 1, %s12
      %p94 = scmp.lt.s32.totalorder %s12, 3
      %p95 = pnand %p93, %p94
      %p96 = pneg %p95
      // Predicated region
      $region9: #{tpu_custom_call.1} parent=5 // pred_check
        _
      $region10: #{tpu_custom_call.1} parent=5 // pred_check_branch
        %98 = sbr.rel (%p95) target = $region12
      $region11: #{tpu_custom_call.1} parent=5 // pred_region
        %s99 = ssub.s32 %s12, 1
        // Predicated region
        $region13: #{tpu_custom_call.1} parent=11 // pred_check
          %p100 = pneg %p59
        $region14: #{tpu_custom_call.1} parent=11 // pred_check_branch
          %102 = sbr.rel (%p100) target = $region16
        $region15: #{tpu_custom_call.1} parent=11 // pred_region
          %s104 = ssub.s32 2048, 2048
          %105 = vsyncadd [#allocation3], %s104
          %s106 = sshll.u32 [#allocation2], 4
          %s107 = int_to_ptr.vmem [resolvable:$true] %s106
          %112 = dma.hbm_to_vmem [thread:$0]  %s1, 2048, %s107, [#allocation3], 128, 128, 8
        $region16: #{tpu_custom_call.1} parent=11 // pred_fallthru
          _
      $region12: #{tpu_custom_call.1} parent=5 // pred_fallthru
        _
      %p113 = scmp.lt.s32.totalorder %s12, 2
      // Predicated region
      $region17: #{tpu_custom_call.1} parent=5 // pred_check
        %p114 = pneg %p113
      $region18: #{tpu_custom_call.1} parent=5 // pred_check_branch
        %116 = sbr.rel (%p114) target = $region20
      $region19: #{tpu_custom_call.1} parent=5 // pred_region
        // Predicated region
        $region21: #{tpu_custom_call.1} parent=19 // pred_check
          %p117 = pneg %p32
        $region22: #{tpu_custom_call.1} parent=19 // pred_check_branch
          %119 = sbr.rel (%p117) target = $region24
        $region23: #{tpu_custom_call.1} parent=19 // pred_region
          %s120 = smul.u32 3, %s12
          %p121 = scmp.lt.s32.totalorder %s120, 5
          %s122 = scalar_select %p121, %s120, 5
          %s123 = smul.addr %s122, 8
          %s124 = scalar_lea.vmem %s0, %s123
          %s125 = smul.u32 3, %s12
        $region24: #{tpu_custom_call.1} parent=19 // pred_fallthru
          _
      $region20: #{tpu_custom_call.1} parent=5 // pred_fallthru
        _
      %p126 = scmp.le.s32.totalorder 1, %s12
      %p127 = scmp.lt.s32.totalorder %s12, 3
      %p128 = pnand %p126, %p127
      %p129 = pneg %p128
      // Predicated region
      $region25: #{tpu_custom_call.1} parent=5 // pred_check
        _
      $region26: #{tpu_custom_call.1} parent=5 // pred_check_branch
        %131 = sbr.rel (%p128) target = $region28
      $region27: #{tpu_custom_call.1} parent=5 // pred_region
        %s132 = ssub.s32 %s12, 1
        // Predicated region
        $region29: #{tpu_custom_call.1} parent=27 // pred_check
          %p133 = pneg %p59
        $region30: #{tpu_custom_call.1} parent=27 // pred_check_branch
          %135 = sbr.rel (%p133) target = $region32
        $region31: #{tpu_custom_call.1} parent=27 // pred_region
          %136 = dma.done [#allocation3], 2048
        $region32: #{tpu_custom_call.1} parent=27 // pred_fallthru
          _
        %s137 = smul.u32 3, %s17
        %p138 = scmp.lt.s32.totalorder %s137, 5
        %s139 = scalar_select %p138, %s137, 5
        %s140 = smul.addr %s139, 8
        %s141 = scalar_lea.vmem %s0, %s140
        %p142 = pneg %p38
        %p143 = pneg %p35
        %p144 = pneg %p59
        %p145 = pneg %p56
        %p146 = pneg %p85
        %p147 = pneg %p82
        %s148 = sand.u32 %s72, 1
        %s149 = scalar_lea.sflag [#allocation4], %s148
        %s150 = sand.u32 %s72, 1
        %s151 = smul.addr %s150, 24
        %s152 = scalar_lea.vmem [#allocation5], %s151
        %s153 = smul.u32 3, %s17
        %p154 = scmp.lt.s32.totalorder %s153, 5
        %s155 = scalar_select %p154, %s153, 5
        %s156 = smul.addr %s155, 8
        %s157 = scalar_lea.vmem %s0, %s156
        %s158 = smul.u32 3, %s17
        %s159 = smul.u32 3, %s17
        %v160 = vld [vmem:[%s157] sm:$0xff]
        %v161 = vld [vmem:[%s157 + $0x8] sm:$0xff]
        %v162 = vld [vmem:[%s157 + $0x10] sm:$0xff]
        %v163 = vlaneseq
        %v164 = vand.u32 %v163, 127
        %165 = vset.pattern.permute.xlu0 0
        %166 = vperm.xlu0 %165, %v160
        %v167 = vpop.permute.xlu0 %166
        %168 = vset.pattern.permute.xlu0 0
        %169 = vperm.xlu0 %168, %v161
        %v170 = vpop.permute.xlu0 %169
        %171 = vset.pattern.permute.xlu0 0
        %172 = vperm.xlu0 %171, %v162
        %v173 = vpop.permute.xlu0 %172
        %vm174 = vcmp.eq.s32.totalorder %v167, %v164
        %vm175 = vcmp.eq.s32.totalorder %v170, %v164
        %vm176 = vcmp.eq.s32.totalorder %v173, %v164
        %v177 = vsel %vm174, 1, 0
        %v178 = vsel %vm175, 1, 0
        %v179 = vsel %vm176, 1, 0
        %v180 = vcvt.s32.f32 %v177
        %v181 = vcvt.s32.f32 %v178
        %v182 = vcvt.s32.f32 %v179
        %v183 = vld [vmem:[#allocation2] sm:$0xff]
        %v184 = vld [vmem:[#allocation2 + $0x8] sm:$0xff]
        %v185 = vld [vmem:[#allocation2 + $0x10] sm:$0xff]
        %v186 = vld [vmem:[#allocation2 + $0x18] sm:$0xff]
        %v187 = vld [vmem:[#allocation2 + $0x20] sm:$0xff]
        %v188 = vld [vmem:[#allocation2 + $0x28] sm:$0xff]
        %v189 = vld [vmem:[#allocation2 + $0x30] sm:$0xff]
        %v190 = vld [vmem:[#allocation2 + $0x38] sm:$0xff]
        %v191 = vld [vmem:[#allocation2 + $0x40] sm:$0xff]
        %v192 = vld [vmem:[#allocation2 + $0x48] sm:$0xff]
        %v193 = vld [vmem:[#allocation2 + $0x50] sm:$0xff]
        %v194 = vld [vmem:[#allocation2 + $0x58] sm:$0xff]
        %v195 = vld [vmem:[#allocation2 + $0x60] sm:$0xff]
        %v196 = vld [vmem:[#allocation2 + $0x68] sm:$0xff]
        %v197 = vld [vmem:[#allocation2 + $0x70] sm:$0xff]
        %v198 = vld [vmem:[#allocation2 + $0x78] sm:$0xff]
        %199 = vmatprep.subr.mxu0 0.0
        %v200 = vand.u32 %v198, 4294901760
        %201 = vmatpush1.msra.mxu0 %v200
        %202 = vmatprep.subr.mxu0 0.0
        %v203 = vand.u32 %v197, 4294901760
        %204 = vmatpush1.msra.mxu0 %v203
        %205 = vmatprep.subr.mxu0 0.0
        %v206 = vand.u32 %v196, 4294901760
        %207 = vmatpush1.msra.mxu0 %v206
        %208 = vmatprep.subr.mxu0 0.0
        %v209 = vand.u32 %v195, 4294901760
        %210 = vmatpush1.msra.mxu0 %v209
        %211 = vmatprep.subr.mxu0 0.0
        %v212 = vand.u32 %v194, 4294901760
        %213 = vmatpush1.msra.mxu0 %v212
        %214 = vmatprep.subr.mxu0 0.0
        %v215 = vand.u32 %v193, 4294901760
        %216 = vmatpush1.msra.mxu0 %v215
        %217 = vmatprep.subr.mxu0 0.0
        %v218 = vand.u32 %v192, 4294901760
        %219 = vmatpush1.msra.mxu0 %v218
        %220 = vmatprep.subr.mxu0 0.0
        %v221 = vand.u32 %v191, 4294901760
        %222 = vmatpush1.msra.mxu0 %v221
        %223 = vmatprep.subr.mxu0 0.0
        %v224 = vand.u32 %v190, 4294901760
        %225 = vmatpush1.msra.mxu0 %v224
        %226 = vmatprep.subr.mxu0 0.0
        %v227 = vand.u32 %v189, 4294901760
        %228 = vmatpush1.msra.mxu0 %v227
        %229 = vmatprep.subr.mxu0 0.0
        %v230 = vand.u32 %v188, 4294901760
        %231 = vmatpush1.msra.mxu0 %v230
        %232 = vmatprep.subr.mxu0 0.0
        %v233 = vand.u32 %v187, 4294901760
        %234 = vmatpush1.msra.mxu0 %v233
        %235 = vmatprep.subr.mxu0 0.0
        %v236 = vand.u32 %v186, 4294901760
        %237 = vmatpush1.msra.mxu0 %v236
        %238 = vmatprep.subr.mxu0 0.0
        %v239 = vand.u32 %v185, 4294901760
        %240 = vmatpush1.msra.mxu0 %v239
        %241 = vmatprep.subr.mxu0 0.0
        %v242 = vand.u32 %v184, 4294901760
        %243 = vmatpush1.msra.mxu0 %v242
        %244 = vmatprep.subr.mxu0 0.0
        %v245 = vand.u32 %v183, 4294901760
        %246 = vmatpush1.msra.mxu0 %v245
        %247 = vmatprep.subr.mxu0 0.0
        %248 = vmatpush2.msra.mxu0 0.0
        %249 = vmatprep.subr.mxu0 0.0
        %250 = vmatpush2.msra.mxu0 0.0
        %251 = vmatprep.subr.mxu0 0.0
        %252 = vmatpush2.msra.mxu0 0.0
        %253 = vmatprep.subr.mxu0 0.0
        %254 = vmatpush2.msra.mxu0 0.0
        %255 = vmatprep.subr.mxu0 0.0
        %256 = vmatpush2.msra.mxu0 0.0
        %257 = vmatprep.subr.mxu0 0.0
        %258 = vmatpush2.msra.mxu0 0.0
        %259 = vmatprep.subr.mxu0 0.0
        %260 = vmatpush2.msra.mxu0 0.0
        %261 = vmatprep.subr.mxu0 0.0
        %262 = vmatpush2.msra.mxu0 0.0
        %263 = vmatprep.subr.mxu0 0.0
        %264 = vmatpush2.msra.mxu0 0.0
        %265 = vmatprep.subr.mxu0 0.0
        %266 = vmatpush2.msra.mxu0 0.0
        %267 = vmatprep.subr.mxu0 0.0
        %268 = vmatpush2.msra.mxu0 0.0
        %269 = vmatprep.subr.mxu0 0.0
        %270 = vmatpush2.msra.mxu0 0.0
        %271 = vmatprep.subr.mxu0 0.0
        %272 = vmatpush2.msra.mxu0 0.0
        %273 = vmatprep.subr.mxu0 0.0
        %274 = vmatpush2.msra.mxu0 0.0
        %275 = vmatprep.subr.mxu0 0.0
        %276 = vmatpush2.msra.mxu0 0.0
        %277 = vmatprep.subr.mxu0 0.0
        %278 = vmatpush2.msra.mxu0 0.0
        %279 = vmatprep.mubr.f32.mxu0 0.0
        %v280 = vand.u32 %v180, 4294901760
        %v281 = vsub.f32 %v180, %v280
        %v282 = vand.u32 %v281, 4294901760
        %v283 = vsub.f32 %v281, %v282
        %v284 = vand.u32 %v283, 4294901760
        %285 = vmatmul.mubr.f32.gmra.mxu0 %v284
        %v286 = vpop.f32.mrf.mxu0
        %v287 = vadd.f32 0.0, %v286
        %v288 = vpop.f32.mrf.mxu0
        %289 = vmatprep.mubr.f32.mxu0 0.0
        %v290 = vand.u32 %v181, 4294901760
        %v291 = vsub.f32 %v181, %v290
        %v292 = vand.u32 %v291, 4294901760
        %v293 = vsub.f32 %v291, %v292
        %v294 = vand.u32 %v293, 4294901760
        %295 = vmatmul.mubr.f32.gmra.mxu0 %v294
        %v296 = vpop.f32.mrf.mxu0
        %v297 = vadd.f32 0.0, %v296
        %v298 = vpop.f32.mrf.mxu0
        %299 = vmatprep.mubr.f32.mxu0 0.0
        %v300 = vand.u32 %v182, 4294901760
        %v301 = vsub.f32 %v182, %v300
        %v302 = vand.u32 %v301, 4294901760
        %v303 = vsub.f32 %v301, %v302
        %v304 = vand.u32 %v303, 4294901760
        %305 = vmatmul.mubr.f32.gmra.mxu0 %v304
        %v306 = vpop.f32.mrf.mxu0
        %v307 = vadd.f32 0.0, %v306
        %v308 = vpop.f32.mrf.mxu0
        %309 = vdwg.mxu0
        %310 = vmatprep.subr.mxu0 0.0
        %v311 = vand.u32 %v198, 4294901760
        %v312 = vsub.f32 %v198, %v311
        %v313 = vand.u32 %v312, 4294901760
        %v314 = vsub.f32 %v312, %v313
        %v315 = vand.u32 %v314, 4294901760
        %316 = vmatpush1.msra.mxu0 %v315
        %317 = vmatprep.subr.mxu0 0.0
        %v318 = vand.u32 %v197, 4294901760
        %v319 = vsub.f32 %v197, %v318
        %v320 = vand.u32 %v319, 4294901760
        %v321 = vsub.f32 %v319, %v320
        %v322 = vand.u32 %v321, 4294901760
        %323 = vmatpush1.msra.mxu0 %v322
        %324 = vmatprep.subr.mxu0 0.0
        %v325 = vand.u32 %v196, 4294901760
        %v326 = vsub.f32 %v196, %v325
        %v327 = vand.u32 %v326, 4294901760
        %v328 = vsub.f32 %v326, %v327
        %v329 = vand.u32 %v328, 4294901760
        %330 = vmatpush1.msra.mxu0 %v329
        %331 = vmatprep.subr.mxu0 0.0
        %v332 = vand.u32 %v195, 4294901760
        %v333 = vsub.f32 %v195, %v332
        %v334 = vand.u32 %v333, 4294901760
        %v335 = vsub.f32 %v333, %v334
        %v336 = vand.u32 %v335, 4294901760
        %337 = vmatpush1.msra.mxu0 %v336
        %338 = vmatprep.subr.mxu0 0.0
        %v339 = vand.u32 %v194, 4294901760
        %v340 = vsub.f32 %v194, %v339
        %v341 = vand.u32 %v340, 4294901760
        %v342 = vsub.f32 %v340, %v341
        %v343 = vand.u32 %v342, 4294901760
        %344 = vmatpush1.msra.mxu0 %v343
        %345 = vmatprep.subr.mxu0 0.0
        %v346 = vand.u32 %v193, 4294901760
        %v347 = vsub.f32 %v193, %v346
        %v348 = vand.u32 %v347, 4294901760
        %v349 = vsub.f32 %v347, %v348
        %v350 = vand.u32 %v349, 4294901760
        %351 = vmatpush1.msra.mxu0 %v350
        %352 = vmatprep.subr.mxu0 0.0
        %v353 = vand.u32 %v192, 4294901760
        %v354 = vsub.f32 %v192, %v353
        %v355 = vand.u32 %v354, 4294901760
        %v356 = vsub.f32 %v354, %v355
        %v357 = vand.u32 %v356, 4294901760
        %358 = vmatpush1.msra.mxu0 %v357
        %359 = vmatprep.subr.mxu0 0.0
        %v360 = vand.u32 %v191, 4294901760
        %v361 = vsub.f32 %v191, %v360
        %v362 = vand.u32 %v361, 4294901760
        %v363 = vsub.f32 %v361, %v362
        %v364 = vand.u32 %v363, 4294901760
        %365 = vmatpush1.msra.mxu0 %v364
        %366 = vmatprep.subr.mxu0 0.0
        %v367 = vand.u32 %v190, 4294901760
        %v368 = vsub.f32 %v190, %v367
        %v369 = vand.u32 %v368, 4294901760
        %v370 = vsub.f32 %v368, %v369
        %v371 = vand.u32 %v370, 4294901760
        %372 = vmatpush1.msra.mxu0 %v371
        %373 = vmatprep.subr.mxu0 0.0
        %v374 = vand.u32 %v189, 4294901760
        %v375 = vsub.f32 %v189, %v374
        %v376 = vand.u32 %v375, 4294901760
        %v377 = vsub.f32 %v375, %v376
        %v378 = vand.u32 %v377, 4294901760
        %379 = vmatpush1.msra.mxu0 %v378
        %380 = vmatprep.subr.mxu0 0.0
        %v381 = vand.u32 %v188, 4294901760
        %v382 = vsub.f32 %v188, %v381
        %v383 = vand.u32 %v382, 4294901760
        %v384 = vsub.f32 %v382, %v383
        %v385 = vand.u32 %v384, 4294901760
        %386 = vmatpush1.msra.mxu0 %v385
        %387 = vmatprep.subr.mxu0 0.0
        %v388 = vand.u32 %v187, 4294901760
        %v389 = vsub.f32 %v187, %v388
        %v390 = vand.u32 %v389, 4294901760
        %v391 = vsub.f32 %v389, %v390
        %v392 = vand.u32 %v391, 4294901760
        %393 = vmatpush1.msra.mxu0 %v392
        %394 = vmatprep.subr.mxu0 0.0
        %v395 = vand.u32 %v186, 4294901760
        %v396 = vsub.f32 %v186, %v395
        %v397 = vand.u32 %v396, 4294901760
        %v398 = vsub.f32 %v396, %v397
        %v399 = vand.u32 %v398, 4294901760
        %400 = vmatpush1.msra.mxu0 %v399
        %401 = vmatprep.subr.mxu0 0.0
        %v402 = vand.u32 %v185, 4294901760
        %v403 = vsub.f32 %v185, %v402
        %v404 = vand.u32 %v403, 4294901760
        %v405 = vsub.f32 %v403, %v404
        %v406 = vand.u32 %v405, 4294901760
        %407 = vmatpush1.msra.mxu0 %v406
        %408 = vmatprep.subr.mxu0 0.0
        %v409 = vand.u32 %v184, 4294901760
        %v410 = vsub.f32 %v184, %v409
        %v411 = vand.u32 %v410, 4294901760
        %v412 = vsub.f32 %v410, %v411
        %v413 = vand.u32 %v412, 4294901760
        %414 = vmatpush1.msra.mxu0 %v413
        %415 = vmatprep.subr.mxu0 0.0
        %v416 = vand.u32 %v183, 4294901760
        %v417 = vsub.f32 %v183, %v416
        %v418 = vand.u32 %v417, 4294901760
        %v419 = vsub.f32 %v417, %v418
        %v420 = vand.u32 %v419, 4294901760
        %421 = vmatpush1.msra.mxu0 %v420
        %422 = vmatprep.subr.mxu0 0.0
        %423 = vmatpush2.msra.mxu0 0.0
        %424 = vmatprep.subr.mxu0 0.0
        %425 = vmatpush2.msra.mxu0 0.0
        %426 = vmatprep.subr.mxu0 0.0
        %427 = vmatpush2.msra.mxu0 0.0
        %428 = vmatprep.subr.mxu0 0.0
        %429 = vmatpush2.msra.mxu0 0.0
        %430 = vmatprep.subr.mxu0 0.0
        %431 = vmatpush2.msra.mxu0 0.0
        %432 = vmatprep.subr.mxu0 0.0
        %433 = vmatpush2.msra.mxu0 0.0
        %434 = vmatprep.subr.mxu0 0.0
        %435 = vmatpush2.msra.mxu0 0.0
        %436 = vmatprep.subr.mxu0 0.0
        %437 = vmatpush2.msra.mxu0 0.0
        %438 = vmatprep.subr.mxu0 0.0
        %439 = vmatpush2.msra.mxu0 0.0
        %440 = vmatprep.subr.mxu0 0.0
        %441 = vmatpush2.msra.mxu0 0.0
        %442 = vmatprep.subr.mxu0 0.0
        %443 = vmatpush2.msra.mxu0 0.0
        %444 = vmatprep.subr.mxu0 0.0
        %445 = vmatpush2.msra.mxu0 0.0
        %446 = vmatprep.subr.mxu0 0.0
        %447 = vmatpush2.msra.mxu0 0.0
        %448 = vmatprep.subr.mxu0 0.0
        %449 = vmatpush2.msra.mxu0 0.0
        %450 = vmatprep.subr.mxu0 0.0
        %451 = vmatpush2.msra.mxu0 0.0
        %452 = vmatprep.subr.mxu0 0.0
        %453 = vmatpush2.msra.mxu0 0.0
        %454 = vmatprep.mubr.f32.mxu0 0.0
        %v455 = vand.u32 %v180, 4294901760
        %456 = vmatmul.mubr.f32.gmra.mxu0 %v455
        %v457 = vpop.f32.mrf.mxu0
        %v458 = vadd.f32 %v287, %v457
        %v459 = vpop.f32.mrf.mxu0
        %460 = vmatprep.mubr.f32.mxu0 0.0
        %v461 = vand.u32 %v181, 4294901760
        %462 = vmatmul.mubr.f32.gmra.mxu0 %v461
        %v463 = vpop.f32.mrf.mxu0
        %v464 = vadd.f32 %v297, %v463
        %v465 = vpop.f32.mrf.mxu0
        %466 = vmatprep.mubr.f32.mxu0 0.0
        %v467 = vand.u32 %v182, 4294901760
        %468 = vmatmul.mubr.f32.gmra.mxu0 %v467
        %v469 = vpop.f32.mrf.mxu0
        %v470 = vadd.f32 %v307, %v469
        %v471 = vpop.f32.mrf.mxu0
        %472 = vdwg.mxu0
        %473 = vmatprep.subr.mxu0 0.0
        %v474 = vand.u32 %v198, 4294901760
        %v475 = vsub.f32 %v198, %v474
        %476 = vmatpush1.msra.mxu0 %v475
        %477 = vmatprep.subr.mxu0 0.0
        %v478 = vand.u32 %v197, 4294901760
        %v479 = vsub.f32 %v197, %v478
        %480 = vmatpush1.msra.mxu0 %v479
        %481 = vmatprep.subr.mxu0 0.0
        %v482 = vand.u32 %v196, 4294901760
        %v483 = vsub.f32 %v196, %v482
        %484 = vmatpush1.msra.mxu0 %v483
        %485 = vmatprep.subr.mxu0 0.0
        %v486 = vand.u32 %v195, 4294901760
        %v487 = vsub.f32 %v195, %v486
        %488 = vmatpush1.msra.mxu0 %v487
        %489 = vmatprep.subr.mxu0 0.0
        %v490 = vand.u32 %v194, 4294901760
        %v491 = vsub.f32 %v194, %v490
        %492 = vmatpush1.msra.mxu0 %v491
        %493 = vmatprep.subr.mxu0 0.0
        %v494 = vand.u32 %v193, 4294901760
        %v495 = vsub.f32 %v193, %v494
        %496 = vmatpush1.msra.mxu0 %v495
        %497 = vmatprep.subr.mxu0 0.0
        %v498 = vand.u32 %v192, 4294901760
        %v499 = vsub.f32 %v192, %v498
        %500 = vmatpush1.msra.mxu0 %v499
        %501 = vmatprep.subr.mxu0 0.0
        %v502 = vand.u32 %v191, 4294901760
        %v503 = vsub.f32 %v191, %v502
        %504 = vmatpush1.msra.mxu0 %v503
        %505 = vmatprep.subr.mxu0 0.0
        %v506 = vand.u32 %v190, 4294901760
        %v507 = vsub.f32 %v190, %v506
        %508 = vmatpush1.msra.mxu0 %v507
        %509 = vmatprep.subr.mxu0 0.0
        %v510 = vand.u32 %v189, 4294901760
        %v511 = vsub.f32 %v189, %v510
        %512 = vmatpush1.msra.mxu0 %v511
        %513 = vmatprep.subr.mxu0 0.0
        %v514 = vand.u32 %v188, 4294901760
        %v515 = vsub.f32 %v188, %v514
        %516 = vmatpush1.msra.mxu0 %v515
        %517 = vmatprep.subr.mxu0 0.0
        %v518 = vand.u32 %v187, 4294901760
        %v519 = vsub.f32 %v187, %v518
        %520 = vmatpush1.msra.mxu0 %v519
        %521 = vmatprep.subr.mxu0 0.0
        %v522 = vand.u32 %v186, 4294901760
        %v523 = vsub.f32 %v186, %v522
        %524 = vmatpush1.msra.mxu0 %v523
        %525 = vmatprep.subr.mxu0 0.0
        %v526 = vand.u32 %v185, 4294901760
        %v527 = vsub.f32 %v185, %v526
        %528 = vmatpush1.msra.mxu0 %v527
        %529 = vmatprep.subr.mxu0 0.0
        %v530 = vand.u32 %v184, 4294901760
        %v531 = vsub.f32 %v184, %v530
        %532 = vmatpush1.msra.mxu0 %v531
        %533 = vmatprep.subr.mxu0 0.0
        %v534 = vand.u32 %v183, 4294901760
        %v535 = vsub.f32 %v183, %v534
        %536 = vmatpush1.msra.mxu0 %v535
        %537 = vmatprep.subr.mxu0 0.0
        %538 = vmatpush2.msra.mxu0 0.0
        %539 = vmatprep.subr.mxu0 0.0
        %540 = vmatpush2.msra.mxu0 0.0
        %541 = vmatprep.subr.mxu0 0.0
        %542 = vmatpush2.msra.mxu0 0.0
        %543 = vmatprep.subr.mxu0 0.0
        %544 = vmatpush2.msra.mxu0 0.0
        %545 = vmatprep.subr.mxu0 0.0
        %546 = vmatpush2.msra.mxu0 0.0
        %547 = vmatprep.subr.mxu0 0.0
        %548 = vmatpush2.msra.mxu0 0.0
        %549 = vmatprep.subr.mxu0 0.0
        %550 = vmatpush2.msra.mxu0 0.0
        %551 = vmatprep.subr.mxu0 0.0
        %552 = vmatpush2.msra.mxu0 0.0
        %553 = vmatprep.subr.mxu0 0.0
        %554 = vmatpush2.msra.mxu0 0.0
        %555 = vmatprep.subr.mxu0 0.0
        %556 = vmatpush2.msra.mxu0 0.0
        %557 = vmatprep.subr.mxu0 0.0
        %558 = vmatpush2.msra.mxu0 0.0
        %559 = vmatprep.subr.mxu0 0.0
        %560 = vmatpush2.msra.mxu0 0.0
        %561 = vmatprep.subr.mxu0 0.0
        %562 = vmatpush2.msra.mxu0 0.0
        %563 = vmatprep.subr.mxu0 0.0
        %564 = vmatpush2.msra.mxu0 0.0
        %565 = vmatprep.subr.mxu0 0.0
        %566 = vmatpush2.msra.mxu0 0.0
        %567 = vmatprep.subr.mxu0 0.0
        %568 = vmatpush2.msra.mxu0 0.0
        %569 = vmatprep.mubr.f32.mxu0 0.0
        %v570 = vand.u32 %v180, 4294901760
        %v571 = vsub.f32 %v180, %v570
        %572 = vmatmul.mubr.f32.gmra.mxu0 %v571
        %v573 = vpop.f32.mrf.mxu0
        %v574 = vadd.f32 %v458, %v573
        %v575 = vpop.f32.mrf.mxu0
        %576 = vmatprep.mubr.f32.mxu0 0.0
        %v577 = vand.u32 %v181, 4294901760
        %v578 = vsub.f32 %v181, %v577
        %579 = vmatmul.mubr.f32.gmra.mxu0 %v578
        %v580 = vpop.f32.mrf.mxu0
        %v581 = vadd.f32 %v464, %v580
        %v582 = vpop.f32.mrf.mxu0
        %583 = vmatprep.mubr.f32.mxu0 0.0
        %v584 = vand.u32 %v182, 4294901760
        %v585 = vsub.f32 %v182, %v584
        %586 = vmatmul.mubr.f32.gmra.mxu0 %v585
        %v587 = vpop.f32.mrf.mxu0
        %v588 = vadd.f32 %v470, %v587
        %v589 = vpop.f32.mrf.mxu0
        %590 = vdwg.mxu0
        %591 = vmatprep.subr.mxu0 0.0
        %v592 = vand.u32 %v198, 4294901760
        %593 = vmatpush1.msra.mxu0 %v592
        %594 = vmatprep.subr.mxu0 0.0
        %v595 = vand.u32 %v197, 4294901760
        %596 = vmatpush1.msra.mxu0 %v595
        %597 = vmatprep.subr.mxu0 0.0
        %v598 = vand.u32 %v196, 4294901760
        %599 = vmatpush1.msra.mxu0 %v598
        %600 = vmatprep.subr.mxu0 0.0
        %v601 = vand.u32 %v195, 4294901760
        %602 = vmatpush1.msra.mxu0 %v601
        %603 = vmatprep.subr.mxu0 0.0
        %v604 = vand.u32 %v194, 4294901760
        %605 = vmatpush1.msra.mxu0 %v604
        %606 = vmatprep.subr.mxu0 0.0
        %v607 = vand.u32 %v193, 4294901760
        %608 = vmatpush1.msra.mxu0 %v607
        %609 = vmatprep.subr.mxu0 0.0
        %v610 = vand.u32 %v192, 4294901760
        %611 = vmatpush1.msra.mxu0 %v610
        %612 = vmatprep.subr.mxu0 0.0
        %v613 = vand.u32 %v191, 4294901760
        %614 = vmatpush1.msra.mxu0 %v613
        %615 = vmatprep.subr.mxu0 0.0
        %v616 = vand.u32 %v190, 4294901760
        %617 = vmatpush1.msra.mxu0 %v616
        %618 = vmatprep.subr.mxu0 0.0
        %v619 = vand.u32 %v189, 4294901760
        %620 = vmatpush1.msra.mxu0 %v619
        %621 = vmatprep.subr.mxu0 0.0
        %v622 = vand.u32 %v188, 4294901760
        %623 = vmatpush1.msra.mxu0 %v622
        %624 = vmatprep.subr.mxu0 0.0
        %v625 = vand.u32 %v187, 4294901760
        %626 = vmatpush1.msra.mxu0 %v625
        %627 = vmatprep.subr.mxu0 0.0
        %v628 = vand.u32 %v186, 4294901760
        %629 = vmatpush1.msra.mxu0 %v628
        %630 = vmatprep.subr.mxu0 0.0
        %v631 = vand.u32 %v185, 4294901760
        %632 = vmatpush1.msra.mxu0 %v631
        %633 = vmatprep.subr.mxu0 0.0
        %v634 = vand.u32 %v184, 4294901760
        %635 = vmatpush1.msra.mxu0 %v634
        %636 = vmatprep.subr.mxu0 0.0
        %v637 = vand.u32 %v183, 4294901760
        %638 = vmatpush1.msra.mxu0 %v637
        %639 = vmatprep.subr.mxu0 0.0
        %640 = vmatpush2.msra.mxu0 0.0
        %641 = vmatprep.subr.mxu0 0.0
        %642 = vmatpush2.msra.mxu0 0.0
        %643 = vmatprep.subr.mxu0 0.0
        %644 = vmatpush2.msra.mxu0 0.0
        %645 = vmatprep.subr.mxu0 0.0
        %646 = vmatpush2.msra.mxu0 0.0
        %647 = vmatprep.subr.mxu0 0.0
        %648 = vmatpush2.msra.mxu0 0.0
        %649 = vmatprep.subr.mxu0 0.0
        %650 = vmatpush2.msra.mxu0 0.0
        %651 = vmatprep.subr.mxu0 0.0
        %652 = vmatpush2.msra.mxu0 0.0
        %653 = vmatprep.subr.mxu0 0.0
        %654 = vmatpush2.msra.mxu0 0.0
        %655 = vmatprep.subr.mxu0 0.0
        %656 = vmatpush2.msra.mxu0 0.0
        %657 = vmatprep.subr.mxu0 0.0
        %658 = vmatpush2.msra.mxu0 0.0
        %659 = vmatprep.subr.mxu0 0.0
        %660 = vmatpush2.msra.mxu0 0.0
        %661 = vmatprep.subr.mxu0 0.0
        %662 = vmatpush2.msra.mxu0 0.0
        %663 = vmatprep.subr.mxu0 0.0
        %664 = vmatpush2.msra.mxu0 0.0
        %665 = vmatprep.subr.mxu0 0.0
        %666 = vmatpush2.msra.mxu0 0.0
        %667 = vmatprep.subr.mxu0 0.0
        %668 = vmatpush2.msra.mxu0 0.0
        %669 = vmatprep.subr.mxu0 0.0
        %670 = vmatpush2.msra.mxu0 0.0
        %671 = vmatprep.mubr.f32.mxu0 0.0
        %v672 = vand.u32 %v180, 4294901760
        %v673 = vsub.f32 %v180, %v672
        %v674 = vand.u32 %v673, 4294901760
        %675 = vmatmul.mubr.f32.gmra.mxu0 %v674
        %v676 = vpop.f32.mrf.mxu0
        %v677 = vadd.f32 %v574, %v676
        %v678 = vpop.f32.mrf.mxu0
        %679 = vmatprep.mubr.f32.mxu0 0.0
        %v680 = vand.u32 %v181, 4294901760
        %v681 = vsub.f32 %v181, %v680
        %v682 = vand.u32 %v681, 4294901760
        %683 = vmatmul.mubr.f32.gmra.mxu0 %v682
        %v684 = vpop.f32.mrf.mxu0
        %v685 = vadd.f32 %v581, %v684
        %v686 = vpop.f32.mrf.mxu0
        %687 = vmatprep.mubr.f32.mxu0 0.0
        %v688 = vand.u32 %v182, 4294901760
        %v689 = vsub.f32 %v182, %v688
        %v690 = vand.u32 %v689, 4294901760
        %691 = vmatmul.mubr.f32.gmra.mxu0 %v690
        %v692 = vpop.f32.mrf.mxu0
        %v693 = vadd.f32 %v588, %v692
        %v694 = vpop.f32.mrf.mxu0
        %695 = vdwg.mxu0
        %696 = vmatprep.subr.mxu0 0.0
        %v697 = vand.u32 %v198, 4294901760
        %v698 = vsub.f32 %v198, %v697
        %v699 = vand.u32 %v698, 4294901760
        %700 = vmatpush1.msra.mxu0 %v699
        %701 = vmatprep.subr.mxu0 0.0
        %v702 = vand.u32 %v197, 4294901760
        %v703 = vsub.f32 %v197, %v702
        %v704 = vand.u32 %v703, 4294901760
        %705 = vmatpush1.msra.mxu0 %v704
        %706 = vmatprep.subr.mxu0 0.0
        %v707 = vand.u32 %v196, 4294901760
        %v708 = vsub.f32 %v196, %v707
        %v709 = vand.u32 %v708, 4294901760
        %710 = vmatpush1.msra.mxu0 %v709
        %711 = vmatprep.subr.mxu0 0.0
        %v712 = vand.u32 %v195, 4294901760
        %v713 = vsub.f32 %v195, %v712
        %v714 = vand.u32 %v713, 4294901760
        %715 = vmatpush1.msra.mxu0 %v714
        %716 = vmatprep.subr.mxu0 0.0
        %v717 = vand.u32 %v194, 4294901760
        %v718 = vsub.f32 %v194, %v717
        %v719 = vand.u32 %v718, 4294901760
        %720 = vmatpush1.msra.mxu0 %v719
        %721 = vmatprep.subr.mxu0 0.0
        %v722 = vand.u32 %v193, 4294901760
        %v723 = vsub.f32 %v193, %v722
        %v724 = vand.u32 %v723, 4294901760
        %725 = vmatpush1.msra.mxu0 %v724
        %726 = vmatprep.subr.mxu0 0.0
        %v727 = vand.u32 %v192, 4294901760
        %v728 = vsub.f32 %v192, %v727
        %v729 = vand.u32 %v728, 4294901760
        %730 = vmatpush1.msra.mxu0 %v729
        %731 = vmatprep.subr.mxu0 0.0
        %v732 = vand.u32 %v191, 4294901760
        %v733 = vsub.f32 %v191, %v732
        %v734 = vand.u32 %v733, 4294901760
        %735 = vmatpush1.msra.mxu0 %v734
        %736 = vmatprep.subr.mxu0 0.0
        %v737 = vand.u32 %v190, 4294901760
        %v738 = vsub.f32 %v190, %v737
        %v739 = vand.u32 %v738, 4294901760
        %740 = vmatpush1.msra.mxu0 %v739
        %741 = vmatprep.subr.mxu0 0.0
        %v742 = vand.u32 %v189, 4294901760
        %v743 = vsub.f32 %v189, %v742
        %v744 = vand.u32 %v743, 4294901760
        %745 = vmatpush1.msra.mxu0 %v744
        %746 = vmatprep.subr.mxu0 0.0
        %v747 = vand.u32 %v188, 4294901760
        %v748 = vsub.f32 %v188, %v747
        %v749 = vand.u32 %v748, 4294901760
        %750 = vmatpush1.msra.mxu0 %v749
        %751 = vmatprep.subr.mxu0 0.0
        %v752 = vand.u32 %v187, 4294901760
        %v753 = vsub.f32 %v187, %v752
        %v754 = vand.u32 %v753, 4294901760
        %755 = vmatpush1.msra.mxu0 %v754
        %756 = vmatprep.subr.mxu0 0.0
        %v757 = vand.u32 %v186, 4294901760
        %v758 = vsub.f32 %v186, %v757
        %v759 = vand.u32 %v758, 4294901760
        %760 = vmatpush1.msra.mxu0 %v759
        %761 = vmatprep.subr.mxu0 0.0
        %v762 = vand.u32 %v185, 4294901760
        %v763 = vsub.f32 %v185, %v762
        %v764 = vand.u32 %v763, 4294901760
        %765 = vmatpush1.msra.mxu0 %v764
        %766 = vmatprep.subr.mxu0 0.0
        %v767 = vand.u32 %v184, 4294901760
        %v768 = vsub.f32 %v184, %v767
        %v769 = vand.u32 %v768, 4294901760
        %770 = vmatpush1.msra.mxu0 %v769
        %771 = vmatprep.subr.mxu0 0.0
        %v772 = vand.u32 %v183, 4294901760
        %v773 = vsub.f32 %v183, %v772
        %v774 = vand.u32 %v773, 4294901760
        %775 = vmatpush1.msra.mxu0 %v774
        %776 = vmatprep.subr.mxu0 0.0
        %777 = vmatpush2.msra.mxu0 0.0
        %778 = vmatprep.subr.mxu0 0.0
        %779 = vmatpush2.msra.mxu0 0.0
        %780 = vmatprep.subr.mxu0 0.0
        %781 = vmatpush2.msra.mxu0 0.0
        %782 = vmatprep.subr.mxu0 0.0
        %783 = vmatpush2.msra.mxu0 0.0
        %784 = vmatprep.subr.mxu0 0.0
        %785 = vmatpush2.msra.mxu0 0.0
        %786 = vmatprep.subr.mxu0 0.0
        %787 = vmatpush2.msra.mxu0 0.0
        %788 = vmatprep.subr.mxu0 0.0
        %789 = vmatpush2.msra.mxu0 0.0
        %790 = vmatprep.subr.mxu0 0.0
        %791 = vmatpush2.msra.mxu0 0.0
        %792 = vmatprep.subr.mxu0 0.0
        %793 = vmatpush2.msra.mxu0 0.0
        %794 = vmatprep.subr.mxu0 0.0
        %795 = vmatpush2.msra.mxu0 0.0
        %796 = vmatprep.subr.mxu0 0.0
        %797 = vmatpush2.msra.mxu0 0.0
        %798 = vmatprep.subr.mxu0 0.0
        %799 = vmatpush2.msra.mxu0 0.0
        %800 = vmatprep.subr.mxu0 0.0
        %801 = vmatpush2.msra.mxu0 0.0
        %802 = vmatprep.subr.mxu0 0.0
        %803 = vmatpush2.msra.mxu0 0.0
        %804 = vmatprep.subr.mxu0 0.0
        %805 = vmatpush2.msra.mxu0 0.0
        %806 = vmatprep.subr.mxu0 0.0
        %807 = vmatpush2.msra.mxu0 0.0
        %808 = vmatprep.mubr.f32.mxu0 0.0
        %v809 = vand.u32 %v180, 4294901760
        %810 = vmatmul.mubr.f32.gmra.mxu0 %v809
        %v811 = vpop.f32.mrf.mxu0
        %v812 = vadd.f32 %v677, %v811
        %v813 = vpop.f32.mrf.mxu0
        %814 = vmatprep.mubr.f32.mxu0 0.0
        %v815 = vand.u32 %v181, 4294901760
        %816 = vmatmul.mubr.f32.gmra.mxu0 %v815
        %v817 = vpop.f32.mrf.mxu0
        %v818 = vadd.f32 %v685, %v817
        %v819 = vpop.f32.mrf.mxu0
        %820 = vmatprep.mubr.f32.mxu0 0.0
        %v821 = vand.u32 %v182, 4294901760
        %822 = vmatmul.mubr.f32.gmra.mxu0 %v821
        %v823 = vpop.f32.mrf.mxu0
        %v824 = vadd.f32 %v693, %v823
        %v825 = vpop.f32.mrf.mxu0
        %826 = vdwg.mxu0
        %827 = vmatprep.subr.mxu0 0.0
        %v828 = vand.u32 %v198, 4294901760
        %829 = vmatpush1.msra.mxu0 %v828
        %830 = vmatprep.subr.mxu0 0.0
        %v831 = vand.u32 %v197, 4294901760
        %832 = vmatpush1.msra.mxu0 %v831
        %833 = vmatprep.subr.mxu0 0.0
        %v834 = vand.u32 %v196, 4294901760
        %835 = vmatpush1.msra.mxu0 %v834
        %836 = vmatprep.subr.mxu0 0.0
        %v837 = vand.u32 %v195, 4294901760
        %838 = vmatpush1.msra.mxu0 %v837
        %839 = vmatprep.subr.mxu0 0.0
        %v840 = vand.u32 %v194, 4294901760
        %841 = vmatpush1.msra.mxu0 %v840
        %842 = vmatprep.subr.mxu0 0.0
        %v843 = vand.u32 %v193, 4294901760
        %844 = vmatpush1.msra.mxu0 %v843
        %845 = vmatprep.subr.mxu0 0.0
        %v846 = vand.u32 %v192, 4294901760
        %847 = vmatpush1.msra.mxu0 %v846
        %848 = vmatprep.subr.mxu0 0.0
        %v849 = vand.u32 %v191, 4294901760
        %850 = vmatpush1.msra.mxu0 %v849
        %851 = vmatprep.subr.mxu0 0.0
        %v852 = vand.u32 %v190, 4294901760
        %853 = vmatpush1.msra.mxu0 %v852
        %854 = vmatprep.subr.mxu0 0.0
        %v855 = vand.u32 %v189, 4294901760
        %856 = vmatpush1.msra.mxu0 %v855
        %857 = vmatprep.subr.mxu0 0.0
        %v858 = vand.u32 %v188, 4294901760
        %859 = vmatpush1.msra.mxu0 %v858
        %860 = vmatprep.subr.mxu0 0.0
        %v861 = vand.u32 %v187, 4294901760
        %862 = vmatpush1.msra.mxu0 %v861
        %863 = vmatprep.subr.mxu0 0.0
        %v864 = vand.u32 %v186, 4294901760
        %865 = vmatpush1.msra.mxu0 %v864
        %866 = vmatprep.subr.mxu0 0.0
        %v867 = vand.u32 %v185, 4294901760
        %868 = vmatpush1.msra.mxu0 %v867
        %869 = vmatprep.subr.mxu0 0.0
        %v870 = vand.u32 %v184, 4294901760
        %871 = vmatpush1.msra.mxu0 %v870
        %872 = vmatprep.subr.mxu0 0.0
        %v873 = vand.u32 %v183, 4294901760
        %874 = vmatpush1.msra.mxu0 %v873
        %875 = vmatprep.subr.mxu0 0.0
        %876 = vmatpush2.msra.mxu0 0.0
        %877 = vmatprep.subr.mxu0 0.0
        %878 = vmatpush2.msra.mxu0 0.0
        %879 = vmatprep.subr.mxu0 0.0
        %880 = vmatpush2.msra.mxu0 0.0
        %881 = vmatprep.subr.mxu0 0.0
        %882 = vmatpush2.msra.mxu0 0.0
        %883 = vmatprep.subr.mxu0 0.0
        %884 = vmatpush2.msra.mxu0 0.0
        %885 = vmatprep.subr.mxu0 0.0
        %886 = vmatpush2.msra.mxu0 0.0
        %887 = vmatprep.subr.mxu0 0.0
        %888 = vmatpush2.msra.mxu0 0.0
        %889 = vmatprep.subr.mxu0 0.0
        %890 = vmatpush2.msra.mxu0 0.0
        %891 = vmatprep.subr.mxu0 0.0
        %892 = vmatpush2.msra.mxu0 0.0
        %893 = vmatprep.subr.mxu0 0.0
        %894 = vmatpush2.msra.mxu0 0.0
        %895 = vmatprep.subr.mxu0 0.0
        %896 = vmatpush2.msra.mxu0 0.0
        %897 = vmatprep.subr.mxu0 0.0
        %898 = vmatpush2.msra.mxu0 0.0
        %899 = vmatprep.subr.mxu0 0.0
        %900 = vmatpush2.msra.mxu0 0.0
        %901 = vmatprep.subr.mxu0 0.0
        %902 = vmatpush2.msra.mxu0 0.0
        %903 = vmatprep.subr.mxu0 0.0
        %904 = vmatpush2.msra.mxu0 0.0
        %905 = vmatprep.subr.mxu0 0.0
        %906 = vmatpush2.msra.mxu0 0.0
        %907 = vmatprep.mubr.f32.mxu0 0.0
        %v908 = vand.u32 %v180, 4294901760
        %909 = vmatmul.mubr.f32.gmra.mxu0 %v908
        %v910 = vpop.f32.mrf.mxu0
        %v911 = vadd.f32 %v812, %v910
        %v912 = vpop.f32.mrf.mxu0
        %913 = vmatprep.mubr.f32.mxu0 0.0
        %v914 = vand.u32 %v181, 4294901760
        %915 = vmatmul.mubr.f32.gmra.mxu0 %v914
        %v916 = vpop.f32.mrf.mxu0
        %v917 = vadd.f32 %v818, %v916
        %v918 = vpop.f32.mrf.mxu0
        %919 = vmatprep.mubr.f32.mxu0 0.0
        %v920 = vand.u32 %v182, 4294901760
        %921 = vmatmul.mubr.f32.gmra.mxu0 %v920
        %v922 = vpop.f32.mrf.mxu0
        %v923 = vadd.f32 %v824, %v922
        %v924 = vpop.f32.mrf.mxu0
        %925 = vdwg.mxu0
        %926 = vst [vmem:[%s152] sm:$0xff] %v911
        %927 = vst [vmem:[%s152 + $0x8] sm:$0xff] %v917
        %928 = vst [vmem:[%s152 + $0x10] sm:$0xff] %v923
        %s929 = sand.u32 %s72, 1
        %s930 = scalar_lea.sflag [#allocation4], %s929
        %s931 = sand.u32 %s72, 1
        %s932 = smul.addr %s931, 24
        %s933 = scalar_lea.vmem [#allocation5], %s932
        // Predicated region
        $region33: #{tpu_custom_call.1} parent=27 // pred_check
          %p934 = pneg %p82
        $region34: #{tpu_custom_call.1} parent=27 // pred_check_branch
          %936 = sbr.rel (%p934) target = $region36
        $region35: #{tpu_custom_call.1} parent=27 // pred_region
          %s937 = smul.u32 3, %s17
          %s939 = ssub.s32 384, 384
          %940 = vsyncadd %s930, %s939
          %s941 = smul.addr %s937, 128
          %s942 = scalar_lea.hbm %s2, %s941
          %s943 = sshll.u32 %s933, 4
          %s944 = int_to_ptr.vmem [resolvable:$true] %s943
          %949 = dma.vmem_to_hbm [thread:$0]  %s944, 384, %s942, %s930, 128, 128, 8
        $region36: #{tpu_custom_call.1} parent=27 // pred_fallthru
          _
      $region28: #{tpu_custom_call.1} parent=5 // pred_fallthru
        _
      %p950 = scmp.le.s32.totalorder 2, %s12
      // Predicated region
      $region37: #{tpu_custom_call.1} parent=5 // pred_check
        %p951 = pneg %p950
      $region38: #{tpu_custom_call.1} parent=5 // pred_check_branch
        %953 = sbr.rel (%p951) target = $region40
      $region39: #{tpu_custom_call.1} parent=5 // pred_region
        %s954 = ssub.s32 %s12, 2
        // Predicated region
        $region41: #{tpu_custom_call.1} parent=39 // pred_check
          %p955 = pneg %p88
        $region42: #{tpu_custom_call.1} parent=39 // pred_check_branch
          %957 = sbr.rel (%p955) target = $region44
        $region43: #{tpu_custom_call.1} parent=39 // pred_region
          %s958 = sand.u32 %s73, 1
          %s959 = scalar_lea.sflag [#allocation4], %s958
          %s960 = sand.u32 %s73, 1
          %s961 = smul.addr %s960, 24
          %s962 = scalar_lea.vmem [#allocation5], %s961
          %963 = dma.done %s959, 384
        $region44: #{tpu_custom_call.1} parent=39 // pred_fallthru
          _
      $region40: #{tpu_custom_call.1} parent=5 // pred_fallthru
        _
    $region6: #{tpu_custom_call.1} parent=1 // loop_footer
      %s16 = sadd.s32 1, %s12
    $region7: #{tpu_custom_call.1} parent=1 // loop_footer_branch
      %11 = sbr.rel target = $region3
    $region8: #{tpu_custom_call.1} parent=1 // loop_exit
      _
    %964 = vsyncpa [#allocation3], 1
    %s965 = scalar_lea.sflag [#allocation3], 1
    %966 = vsyncpa %s965, 1
    %967 = vsyncpa [#allocation4], 1
    %s968 = scalar_lea.sflag [#allocation4], 1
    %969 = vsyncpa %s968, 1

// kernel: tpu_custom_call.1
$region0: #{tpu_custom_call.1}
  #allocation0 [shape = 'u32[]', space=smem, size = 0x4, offset = 0x4, fixed_abs, tag = 'smem constant byte address 0x4 - core index']
  #allocation1 [shape = 'u32[144,128]{1,0:T(1,128)}', space=vmem, size = 0x12000, scoped, tag = 'internal scratch']
  %s0 = inlined_call_operand.vmem [shape: s32[48,1], index: 0, kind: input, shape index: {}]
  %s1 = inlined_call_operand.hbm [shape: f32[128,128], index: 1, kind: input, shape index: {}]
  %s2 = inlined_call_operand.hbm [shape: f32[48,128], index: 2, kind: output, shape index: {}]
  %s3 = sld [smem:[#allocation0]]
  $region45: #{tpu_custom_call.1} parent=0
    _
  %s5 = ssub.s32 1, %s3
  %s6 = scalar_select 0, %s5, %s3
  $region1: #{tpu_custom_call.1} parent=0
    #allocation2 [shape = 'u8[65536]{0}', space=vmem, size = 0x10000, scoped, tag = 'input window, operand 1, single buffered']
    #allocation3 [shape = 's32[2]{0}', space=sflag, size = 0x8, scoped, tag = 'scoped memory for tpu_custom_call.1']
    #allocation4 [shape = 's32[2]{0}', space=sflag, size = 0x8, scoped, tag = 'scoped memory for tpu_custom_call.1']
    #allocation5 [shape = 'u8[24576]{0}', space=vmem, size = 0x6000, scoped, tag = 'output window, operand 0']
    %7 = vsyncpa [#allocation3], 0
    %8 = vsyncpa [#allocation4], 0
    %s9 = scalar_lea.sflag [#allocation4], 1
    %10 = vsyncpa %s9, 0
    loop: start=0, step=1, limit=4
    $region2: #{tpu_custom_call.1} parent=1 // loop_pre_header
      _
    $region3: #{tpu_custom_call.1} parent=1 // loop_header
      %s12 = sphi 0, %s16
      %p13 = scmp.ge.s32.totalorder %s12, 4
      %s22 = sphi 0, %s24
      %s25 = sphi 0, %s22
      %s26 = sphi 0, %s25
      %s42 = sphi 0, %s26
      %s46 = sphi 0, %s46
      %s48 = sphi 0, %s46
      %s49 = sphi 0, %s48
      %s63 = sphi 0, %s49
      %s69 = sphi 0, %s71
      %s72 = sphi 0, %s69
      %s73 = sphi 0, %s72
      %s89 = sphi 0, %s73
    $region4: #{tpu_custom_call.1} parent=1 // loop_header_branch
      %15 = sbr.rel (%p13) target = $region8
    $region5: #{tpu_custom_call.1} parent=1 // loop_body
      %s17 = ssub.s32 %s12, 1
      %s18 = ssub.s32 %s12, 2
      %s19 = sadd.s32 %s12, 1
      %s20 = ssub.s32 %s12, %s19
      %p21 = scmp.eq.s32.totalorder %s20, 0
      %s23 = sadd.s32 %s22, 1
      %s24 = scalar_select %p21, %s22, %s23
      %p27 = pneg %p21
      %p28 = scmp.eq.s32.totalorder %s12, 1
      %p29 = por %p27, %p28
      %p30 = scmp.ne.s32.totalorder %s22, %s25
      %p31 = scmp.eq.s32.totalorder %s12, 0
      %p32 = por %p30, %p31
      %p33 = scmp.ne.s32.totalorder %s22, %s25
      %p34 = scmp.eq.s32.totalorder %s17, 1
      %p35 = por %p33, %p34
      %p36 = scmp.ne.s32.totalorder %s25, %s26
      %p37 = scmp.eq.s32.totalorder %s17, 0
      %p38 = por %p36, %p37
      %p39 = scmp.ne.s32.totalorder %s25, %s26
      %p40 = scmp.eq.s32.totalorder %s18, 1
      %p41 = por %p39, %p40
      %p43 = scmp.ne.s32.totalorder %s26, %s42
      %p44 = scmp.eq.s32.totalorder %s18, 0
      %p45 = por %p43, %p44
      %s47 = sadd.s32 %s46, 1
      %p50 = scmp.eq.s32.totalorder %s12, 1
      %p51 = scmp.ne.s32.totalorder %s46, %s48
      %p52 = scmp.eq.s32.totalorder %s12, 0
      %p53 = por %p51, %p52
      %p54 = scmp.ne.s32.totalorder %s46, %s48
      %p55 = scmp.eq.s32.totalorder %s17, 1
      %p56 = por %p54, %p55
      %p57 = scmp.ne.s32.totalorder %s48, %s49
      %p58 = scmp.eq.s32.totalorder %s17, 0
      %p59 = por %p57, %p58
      %p60 = scmp.ne.s32.totalorder %s48, %s49
      %p61 = scmp.eq.s32.totalorder %s18, 1
      %p62 = por %p60, %p61
      %p64 = scmp.ne.s32.totalorder %s49, %s63
      %p65 = scmp.eq.s32.totalorder %s18, 0
      %p66 = por %p64, %p65
      %s67 = ssub.s32 %s12, %s19
      %p68 = scmp.eq.s32.totalorder %s67, 0
      %s70 = sadd.s32 %s69, 1
      %s71 = scalar_select %p68, %s69, %s70
      %p74 = pneg %p68
      %p75 = scmp.eq.s32.totalorder %s12, 1
      %p76 = por %p74, %p75
      %p77 = scmp.ne.s32.totalorder %s69, %s72
      %p78 = scmp.eq.s32.totalorder %s12, 0
      %p79 = por %p77, %p78
      %p80 = scmp.ne.s32.totalorder %s69, %s72
      %p81 = scmp.eq.s32.totalorder %s17, 1
      %p82 = por %p80, %p81
      %p83 = scmp.ne.s32.totalorder %s72, %s73
      %p84 = scmp.eq.s32.totalorder %s17, 0
      %p85 = por %p83, %p84
      %p86 = scmp.ne.s32.totalorder %s72, %s73
      %p87 = scmp.eq.s32.totalorder %s18, 1
      %p88 = por %p86, %p87
      %p90 = scmp.ne.s32.totalorder %s73, %s89
      %p91 = scmp.eq.s32.totalorder %s18, 0
      %p92 = por %p90, %p91
      %p93 = scmp.le.s32.totalorder 1, %s12
      %p94 = scmp.lt.s32.totalorder %s12, 3
      %p95 = pnand %p93, %p94
      %p96 = pneg %p95
      // Predicated region
      $region9: #{tpu_custom_call.1} parent=5 // pred_check
        _
      $region10: #{tpu_custom_call.1} parent=5 // pred_check_branch
        %98 = sbr.rel (%p95) target = $region12
      $region11: #{tpu_custom_call.1} parent=5 // pred_region
        %s99 = ssub.s32 %s12, 1
        // Predicated region
        $region13: #{tpu_custom_call.1} parent=11 // pred_check
          %p100 = pneg %p59
        $region14: #{tpu_custom_call.1} parent=11 // pred_check_branch
          %102 = sbr.rel (%p100) target = $region16
        $region15: #{tpu_custom_call.1} parent=11 // pred_region
          %s104 = ssub.s32 2048, 2048
          %105 = vsyncadd [#allocation3], %s104
          %s106 = sshll.u32 [#allocation2], 4
          %s107 = int_to_ptr.vmem [resolvable:$true] %s106
          %112 = dma.hbm_to_vmem [thread:$0]  %s1, 2048, %s107, [#allocation3], 128, 128, 8
        $region16: #{tpu_custom_call.1} parent=11 // pred_fallthru
          _
      $region12: #{tpu_custom_call.1} parent=5 // pred_fallthru
        _
      %p113 = scmp.lt.s32.totalorder %s12, 2
      // Predicated region
      $region17: #{tpu_custom_call.1} parent=5 // pred_check
        %p114 = pneg %p113
      $region18: #{tpu_custom_call.1} parent=5 // pred_check_branch
        %116 = sbr.rel (%p114) target = $region20
      $region19: #{tpu_custom_call.1} parent=5 // pred_region
        // Predicated region
        $region21: #{tpu_custom_call.1} parent=19 // pred_check
          %p117 = pneg %p32
        $region22: #{tpu_custom_call.1} parent=19 // pred_check_branch
          %119 = sbr.rel (%p117) target = $region24
        $region23: #{tpu_custom_call.1} parent=19 // pred_region
          %s120 = smul.u32 3, %s12
          %p121 = scmp.lt.s32.totalorder %s120, 5
          %s122 = scalar_select %p121, %s120, 5
          %s123 = smul.addr %s122, 8
          %s124 = scalar_lea.vmem %s0, %s123
          %s125 = smul.u32 3, %s12
        $region24: #{tpu_custom_call.1} parent=19 // pred_fallthru
          _
      $region20: #{tpu_custom_call.1} parent=5 // pred_fallthru
        _
      %p126 = scmp.le.s32.totalorder 1, %s12
      %p127 = scmp.lt.s32.totalorder %s12, 3
      %p128 = pnand %p126, %p127
      %p129 = pneg %p128
      // Predicated region
      $region25: #{tpu_custom_call.1} parent=5 // pred_check
        _
      $region26: #{tpu_custom_call.1} parent=5 // pred_check_branch
        %131 = sbr.rel (%p128) target = $region28
      $region27: #{tpu_custom_call.1} parent=5 // pred_region
        %s132 = ssub.s32 %s12, 1
        // Predicated region
        $region29: #{tpu_custom_call.1} parent=27 // pred_check
          %p133 = pneg %p59
        $region30: #{tpu_custom_call.1} parent=27 // pred_check_branch
          %135 = sbr.rel (%p133) target = $region32
        $region31: #{tpu_custom_call.1} parent=27 // pred_region
          %136 = dma.done [#allocation3], 2048
        $region32: #{tpu_custom_call.1} parent=27 // pred_fallthru
          _
        %s137 = smul.u32 3, %s17
        %p138 = scmp.lt.s32.totalorder %s137, 5
        %s139 = scalar_select %p138, %s137, 5
        %s140 = smul.addr %s139, 8
        %s141 = scalar_lea.vmem %s0, %s140
        %p142 = pneg %p38
        %p143 = pneg %p35
        %p144 = pneg %p59
        %p145 = pneg %p56
        %p146 = pneg %p85
        %p147 = pneg %p82
        %s148 = sand.u32 %s72, 1
        %s149 = scalar_lea.sflag [#allocation4], %s148
        %s150 = sand.u32 %s72, 1
        %s151 = smul.addr %s150, 24
        %s152 = scalar_lea.vmem [#allocation5], %s151
        %s153 = smul.u32 3, %s17
        %p154 = scmp.lt.s32.totalorder %s153, 5
        %s155 = scalar_select %p154, %s153, 5
        %s156 = smul.addr %s155, 8
        %s157 = scalar_lea.vmem %s0, %s156
        %s158 = smul.u32 3, %s17
        %s159 = smul.u32 3, %s17
        %v160 = vld [vmem:[%s157] sm:$0xff]
        %v161 = vld [vmem:[%s157 + $0x8] sm:$0xff]
        %v162 = vld [vmem:[%s157 + $0x10] sm:$0xff]
        %v163 = vlaneseq
        %v164 = vand.u32 %v163, 127
        %165 = vset.pattern.permute.xlu0 0
        %166 = vperm.xlu0 %165, %v160
        %v167 = vpop.permute.xlu0 %166
        %168 = vset.pattern.permute.xlu0 0
        %169 = vperm.xlu0 %168, %v161
        %v170 = vpop.permute.xlu0 %169
        %171 = vset.pattern.permute.xlu0 0
        %172 = vperm.xlu0 %171, %v162
        %v173 = vpop.permute.xlu0 %172
        %vm174 = vcmp.eq.s32.totalorder %v167, %v164
        %vm175 = vcmp.eq.s32.totalorder %v170, %v164
        %vm176 = vcmp.eq.s32.totalorder %v173, %v164
        %v177 = vsel %vm174, 1, 0
        %v178 = vsel %vm175, 1, 0
        %v179 = vsel %vm176, 1, 0
        %v180 = vcvt.s32.f32 %v177
        %v181 = vcvt.s32.f32 %v178
        %v182 = vcvt.s32.f32 %v179
        %v183 = vld [vmem:[#allocation2] sm:$0xff]
        %v184 = vld [vmem:[#allocation2 + $0x8] sm:$0xff]
        %v185 = vld [vmem:[#allocation2 + $0x10] sm:$0xff]
        %v186 = vld [vmem:[#allocation2 + $0x18] sm:$0xff]
        %v187 = vld [vmem:[#allocation2 + $0x20] sm:$0xff]
        %v188 = vld [vmem:[#allocation2 + $0x28] sm:$0xff]
        %v189 = vld [vmem:[#allocation2 + $0x30] sm:$0xff]
        %v190 = vld [vmem:[#allocation2 + $0x38] sm:$0xff]
        %v191 = vld [vmem:[#allocation2 + $0x40] sm:$0xff]
        %v192 = vld [vmem:[#allocation2 + $0x48] sm:$0xff]
        %v193 = vld [vmem:[#allocation2 + $0x50] sm:$0xff]
        %v194 = vld [vmem:[#allocation2 + $0x58] sm:$0xff]
        %v195 = vld [vmem:[#allocation2 + $0x60] sm:$0xff]
        %v196 = vld [vmem:[#allocation2 + $0x68] sm:$0xff]
        %v197 = vld [vmem:[#allocation2 + $0x70] sm:$0xff]
        %v198 = vld [vmem:[#allocation2 + $0x78] sm:$0xff]
        %199 = vmatprep.subr.mxu0 0.0
        %v200 = vand.u32 %v198, 4294901760
        %201 = vmatpush1.msra.mxu0 %v200
        %202 = vmatprep.subr.mxu0 0.0
        %v203 = vand.u32 %v197, 4294901760
        %204 = vmatpush1.msra.mxu0 %v203
        %205 = vmatprep.subr.mxu0 0.0
        %v206 = vand.u32 %v196, 4294901760
        %207 = vmatpush1.msra.mxu0 %v206
        %208 = vmatprep.subr.mxu0 0.0
        %v209 = vand.u32 %v195, 4294901760
        %210 = vmatpush1.msra.mxu0 %v209
        %211 = vmatprep.subr.mxu0 0.0
        %v212 = vand.u32 %v194, 4294901760
        %213 = vmatpush1.msra.mxu0 %v212
        %214 = vmatprep.subr.mxu0 0.0
        %v215 = vand.u32 %v193, 4294901760
        %216 = vmatpush1.msra.mxu0 %v215
        %217 = vmatprep.subr.mxu0 0.0
        %v218 = vand.u32 %v192, 4294901760
        %219 = vmatpush1.msra.mxu0 %v218
        %220 = vmatprep.subr.mxu0 0.0
        %v221 = vand.u32 %v191, 4294901760
        %222 = vmatpush1.msra.mxu0 %v221
        %223 = vmatprep.subr.mxu0 0.0
        %v224 = vand.u32 %v190, 4294901760
        %225 = vmatpush1.msra.mxu0 %v224
        %226 = vmatprep.subr.mxu0 0.0
        %v227 = vand.u32 %v189, 4294901760
        %228 = vmatpush1.msra.mxu0 %v227
        %229 = vmatprep.subr.mxu0 0.0
        %v230 = vand.u32 %v188, 4294901760
        %231 = vmatpush1.msra.mxu0 %v230
        %232 = vmatprep.subr.mxu0 0.0
        %v233 = vand.u32 %v187, 4294901760
        %234 = vmatpush1.msra.mxu0 %v233
        %235 = vmatprep.subr.mxu0 0.0
        %v236 = vand.u32 %v186, 4294901760
        %237 = vmatpush1.msra.mxu0 %v236
        %238 = vmatprep.subr.mxu0 0.0
        %v239 = vand.u32 %v185, 4294901760
        %240 = vmatpush1.msra.mxu0 %v239
        %241 = vmatprep.subr.mxu0 0.0
        %v242 = vand.u32 %v184, 4294901760
        %243 = vmatpush1.msra.mxu0 %v242
        %244 = vmatprep.subr.mxu0 0.0
        %v245 = vand.u32 %v183, 4294901760
        %246 = vmatpush1.msra.mxu0 %v245
        %247 = vmatprep.subr.mxu0 0.0
        %248 = vmatpush2.msra.mxu0 0.0
        %249 = vmatprep.subr.mxu0 0.0
        %250 = vmatpush2.msra.mxu0 0.0
        %251 = vmatprep.subr.mxu0 0.0
        %252 = vmatpush2.msra.mxu0 0.0
        %253 = vmatprep.subr.mxu0 0.0
        %254 = vmatpush2.msra.mxu0 0.0
        %255 = vmatprep.subr.mxu0 0.0
        %256 = vmatpush2.msra.mxu0 0.0
        %257 = vmatprep.subr.mxu0 0.0
        %258 = vmatpush2.msra.mxu0 0.0
        %259 = vmatprep.subr.mxu0 0.0
        %260 = vmatpush2.msra.mxu0 0.0
        %261 = vmatprep.subr.mxu0 0.0
        %262 = vmatpush2.msra.mxu0 0.0
        %263 = vmatprep.subr.mxu0 0.0
        %264 = vmatpush2.msra.mxu0 0.0
        %265 = vmatprep.subr.mxu0 0.0
        %266 = vmatpush2.msra.mxu0 0.0
        %267 = vmatprep.subr.mxu0 0.0
        %268 = vmatpush2.msra.mxu0 0.0
        %269 = vmatprep.subr.mxu0 0.0
        %270 = vmatpush2.msra.mxu0 0.0
        %271 = vmatprep.subr.mxu0 0.0
        %272 = vmatpush2.msra.mxu0 0.0
        %273 = vmatprep.subr.mxu0 0.0
        %274 = vmatpush2.msra.mxu0 0.0
        %275 = vmatprep.subr.mxu0 0.0
        %276 = vmatpush2.msra.mxu0 0.0
        %277 = vmatprep.subr.mxu0 0.0
        %278 = vmatpush2.msra.mxu0 0.0
        %279 = vmatprep.mubr.f32.mxu0 0.0
        %v280 = vand.u32 %v180, 4294901760
        %v281 = vsub.f32 %v180, %v280
        %v282 = vand.u32 %v281, 4294901760
        %v283 = vsub.f32 %v281, %v282
        %v284 = vand.u32 %v283, 4294901760
        %285 = vmatmul.mubr.f32.gmra.mxu0 %v284
        %v286 = vpop.f32.mrf.mxu0
        %v287 = vadd.f32 0.0, %v286
        %v288 = vpop.f32.mrf.mxu0
        %289 = vmatprep.mubr.f32.mxu0 0.0
        %v290 = vand.u32 %v181, 4294901760
        %v291 = vsub.f32 %v181, %v290
        %v292 = vand.u32 %v291, 4294901760
        %v293 = vsub.f32 %v291, %v292
        %v294 = vand.u32 %v293, 4294901760
        %295 = vmatmul.mubr.f32.gmra.mxu0 %v294
        %v296 = vpop.f32.mrf.mxu0
        %v297 = vadd.f32 0.0, %v296
        %v298 = vpop.f32.mrf.mxu0
        %299 = vmatprep.mubr.f32.mxu0 0.0
        %v300 = vand.u32 %v182, 4294901760
        %v301 = vsub.f32 %v182, %v300
        %v302 = vand.u32 %v301, 4294901760
        %v303 = vsub.f32 %v301, %v302
        %v304 = vand.u32 %v303, 4294901760
        %305 = vmatmul.mubr.f32.gmra.mxu0 %v304
        %v306 = vpop.f32.mrf.mxu0
        %v307 = vadd.f32 0.0, %v306
        %v308 = vpop.f32.mrf.mxu0
        %309 = vdwg.mxu0
        %310 = vmatprep.subr.mxu0 0.0
        %v311 = vand.u32 %v198, 4294901760
        %v312 = vsub.f32 %v198, %v311
        %v313 = vand.u32 %v312, 4294901760
        %v314 = vsub.f32 %v312, %v313
        %v315 = vand.u32 %v314, 4294901760
        %316 = vmatpush1.msra.mxu0 %v315
        %317 = vmatprep.subr.mxu0 0.0
        %v318 = vand.u32 %v197, 4294901760
        %v319 = vsub.f32 %v197, %v318
        %v320 = vand.u32 %v319, 4294901760
        %v321 = vsub.f32 %v319, %v320
        %v322 = vand.u32 %v321, 4294901760
        %323 = vmatpush1.msra.mxu0 %v322
        %324 = vmatprep.subr.mxu0 0.0
        %v325 = vand.u32 %v196, 4294901760
        %v326 = vsub.f32 %v196, %v325
        %v327 = vand.u32 %v326, 4294901760
        %v328 = vsub.f32 %v326, %v327
        %v329 = vand.u32 %v328, 4294901760
        %330 = vmatpush1.msra.mxu0 %v329
        %331 = vmatprep.subr.mxu0 0.0
        %v332 = vand.u32 %v195, 4294901760
        %v333 = vsub.f32 %v195, %v332
        %v334 = vand.u32 %v333, 4294901760
        %v335 = vsub.f32 %v333, %v334
        %v336 = vand.u32 %v335, 4294901760
        %337 = vmatpush1.msra.mxu0 %v336
        %338 = vmatprep.subr.mxu0 0.0
        %v339 = vand.u32 %v194, 4294901760
        %v340 = vsub.f32 %v194, %v339
        %v341 = vand.u32 %v340, 4294901760
        %v342 = vsub.f32 %v340, %v341
        %v343 = vand.u32 %v342, 4294901760
        %344 = vmatpush1.msra.mxu0 %v343
        %345 = vmatprep.subr.mxu0 0.0
        %v346 = vand.u32 %v193, 4294901760
        %v347 = vsub.f32 %v193, %v346
        %v348 = vand.u32 %v347, 4294901760
        %v349 = vsub.f32 %v347, %v348
        %v350 = vand.u32 %v349, 4294901760
        %351 = vmatpush1.msra.mxu0 %v350
        %352 = vmatprep.subr.mxu0 0.0
        %v353 = vand.u32 %v192, 4294901760
        %v354 = vsub.f32 %v192, %v353
        %v355 = vand.u32 %v354, 4294901760
        %v356 = vsub.f32 %v354, %v355
        %v357 = vand.u32 %v356, 4294901760
        %358 = vmatpush1.msra.mxu0 %v357
        %359 = vmatprep.subr.mxu0 0.0
        %v360 = vand.u32 %v191, 4294901760
        %v361 = vsub.f32 %v191, %v360
        %v362 = vand.u32 %v361, 4294901760
        %v363 = vsub.f32 %v361, %v362
        %v364 = vand.u32 %v363, 4294901760
        %365 = vmatpush1.msra.mxu0 %v364
        %366 = vmatprep.subr.mxu0 0.0
        %v367 = vand.u32 %v190, 4294901760
        %v368 = vsub.f32 %v190, %v367
        %v369 = vand.u32 %v368, 4294901760
        %v370 = vsub.f32 %v368, %v369
        %v371 = vand.u32 %v370, 4294901760
        %372 = vmatpush1.msra.mxu0 %v371
        %373 = vmatprep.subr.mxu0 0.0
        %v374 = vand.u32 %v189, 4294901760
        %v375 = vsub.f32 %v189, %v374
        %v376 = vand.u32 %v375, 4294901760
        %v377 = vsub.f32 %v375, %v376
        %v378 = vand.u32 %v377, 4294901760
        %379 = vmatpush1.msra.mxu0 %v378
        %380 = vmatprep.subr.mxu0 0.0
        %v381 = vand.u32 %v188, 4294901760
        %v382 = vsub.f32 %v188, %v381
        %v383 = vand.u32 %v382, 4294901760
        %v384 = vsub.f32 %v382, %v383
        %v385 = vand.u32 %v384, 4294901760
        %386 = vmatpush1.msra.mxu0 %v385
        %387 = vmatprep.subr.mxu0 0.0
        %v388 = vand.u32 %v187, 4294901760
        %v389 = vsub.f32 %v187, %v388
        %v390 = vand.u32 %v389, 4294901760
        %v391 = vsub.f32 %v389, %v390
        %v392 = vand.u32 %v391, 4294901760
        %393 = vmatpush1.msra.mxu0 %v392
        %394 = vmatprep.subr.mxu0 0.0
        %v395 = vand.u32 %v186, 4294901760
        %v396 = vsub.f32 %v186, %v395
        %v397 = vand.u32 %v396, 4294901760
        %v398 = vsub.f32 %v396, %v397
        %v399 = vand.u32 %v398, 4294901760
        %400 = vmatpush1.msra.mxu0 %v399
        %401 = vmatprep.subr.mxu0 0.0
        %v402 = vand.u32 %v185, 4294901760
        %v403 = vsub.f32 %v185, %v402
        %v404 = vand.u32 %v403, 4294901760
        %v405 = vsub.f32 %v403, %v404
        %v406 = vand.u32 %v405, 4294901760
        %407 = vmatpush1.msra.mxu0 %v406
        %408 = vmatprep.subr.mxu0 0.0
        %v409 = vand.u32 %v184, 4294901760
        %v410 = vsub.f32 %v184, %v409
        %v411 = vand.u32 %v410, 4294901760
        %v412 = vsub.f32 %v410, %v411
        %v413 = vand.u32 %v412, 4294901760
        %414 = vmatpush1.msra.mxu0 %v413
        %415 = vmatprep.subr.mxu0 0.0
        %v416 = vand.u32 %v183, 4294901760
        %v417 = vsub.f32 %v183, %v416
        %v418 = vand.u32 %v417, 4294901760
        %v419 = vsub.f32 %v417, %v418
        %v420 = vand.u32 %v419, 4294901760
        %421 = vmatpush1.msra.mxu0 %v420
        %422 = vmatprep.subr.mxu0 0.0
        %423 = vmatpush2.msra.mxu0 0.0
        %424 = vmatprep.subr.mxu0 0.0
        %425 = vmatpush2.msra.mxu0 0.0
        %426 = vmatprep.subr.mxu0 0.0
        %427 = vmatpush2.msra.mxu0 0.0
        %428 = vmatprep.subr.mxu0 0.0
        %429 = vmatpush2.msra.mxu0 0.0
        %430 = vmatprep.subr.mxu0 0.0
        %431 = vmatpush2.msra.mxu0 0.0
        %432 = vmatprep.subr.mxu0 0.0
        %433 = vmatpush2.msra.mxu0 0.0
        %434 = vmatprep.subr.mxu0 0.0
        %435 = vmatpush2.msra.mxu0 0.0
        %436 = vmatprep.subr.mxu0 0.0
        %437 = vmatpush2.msra.mxu0 0.0
        %438 = vmatprep.subr.mxu0 0.0
        %439 = vmatpush2.msra.mxu0 0.0
        %440 = vmatprep.subr.mxu0 0.0
        %441 = vmatpush2.msra.mxu0 0.0
        %442 = vmatprep.subr.mxu0 0.0
        %443 = vmatpush2.msra.mxu0 0.0
        %444 = vmatprep.subr.mxu0 0.0
        %445 = vmatpush2.msra.mxu0 0.0
        %446 = vmatprep.subr.mxu0 0.0
        %447 = vmatpush2.msra.mxu0 0.0
        %448 = vmatprep.subr.mxu0 0.0
        %449 = vmatpush2.msra.mxu0 0.0
        %450 = vmatprep.subr.mxu0 0.0
        %451 = vmatpush2.msra.mxu0 0.0
        %452 = vmatprep.subr.mxu0 0.0
        %453 = vmatpush2.msra.mxu0 0.0
        %454 = vmatprep.mubr.f32.mxu0 0.0
        %v455 = vand.u32 %v180, 4294901760
        %456 = vmatmul.mubr.f32.gmra.mxu0 %v455
        %v457 = vpop.f32.mrf.mxu0
        %v458 = vadd.f32 %v287, %v457
        %v459 = vpop.f32.mrf.mxu0
        %460 = vmatprep.mubr.f32.mxu0 0.0
        %v461 = vand.u32 %v181, 4294901760
        %462 = vmatmul.mubr.f32.gmra.mxu0 %v461
        %v463 = vpop.f32.mrf.mxu0
        %v464 = vadd.f32 %v297, %v463
        %v465 = vpop.f32.mrf.mxu0
        %466 = vmatprep.mubr.f32.mxu0 0.0
        %v467 = vand.u32 %v182, 4294901760
        %468 = vmatmul.mubr.f32.gmra.mxu0 %v467
        %v469 = vpop.f32.mrf.mxu0
        %v470 = vadd.f32 %v307, %v469
        %v471 = vpop.f32.mrf.mxu0
        %472 = vdwg.mxu0
        %473 = vmatprep.subr.mxu0 0.0
        %v474 = vand.u32 %v198, 4294901760
        %v475 = vsub.f32 %v198, %v474
        %476 = vmatpush1.msra.mxu0 %v475
        %477 = vmatprep.subr.mxu0 0.0
        %v478 = vand.u32 %v197, 4294901760
        %v479 = vsub.f32 %v197, %v478
        %480 = vmatpush1.msra.mxu0 %v479
        %481 = vmatprep.subr.mxu0 0.0
        %v482 = vand.u32 %v196, 4294901760
        %v483 = vsub.f32 %v196, %v482
        %484 = vmatpush1.msra.mxu0 %v483
        %485 = vmatprep.subr.mxu0 0.0
        %v486 = vand.u32 %v195, 4294901760
        %v487 = vsub.f32 %v195, %v486
        %488 = vmatpush1.msra.mxu0 %v487
        %489 = vmatprep.subr.mxu0 0.0
        %v490 = vand.u32 %v194, 4294901760
        %v491 = vsub.f32 %v194, %v490
        %492 = vmatpush1.msra.mxu0 %v491
        %493 = vmatprep.subr.mxu0 0.0
        %v494 = vand.u32 %v193, 4294901760
        %v495 = vsub.f32 %v193, %v494
        %496 = vmatpush1.msra.mxu0 %v495
        %497 = vmatprep.subr.mxu0 0.0
        %v498 = vand.u32 %v192, 4294901760
        %v499 = vsub.f32 %v192, %v498
        %500 = vmatpush1.msra.mxu0 %v499
        %501 = vmatprep.subr.mxu0 0.0
        %v502 = vand.u32 %v191, 4294901760
        %v503 = vsub.f32 %v191, %v502
        %504 = vmatpush1.msra.mxu0 %v503
        %505 = vmatprep.subr.mxu0 0.0
        %v506 = vand.u32 %v190, 4294901760
        %v507 = vsub.f32 %v190, %v506
        %508 = vmatpush1.msra.mxu0 %v507
        %509 = vmatprep.subr.mxu0 0.0
        %v510 = vand.u32 %v189, 4294901760
        %v511 = vsub.f32 %v189, %v510
        %512 = vmatpush1.msra.mxu0 %v511
        %513 = vmatprep.subr.mxu0 0.0
        %v514 = vand.u32 %v188, 4294901760
        %v515 = vsub.f32 %v188, %v514
        %516 = vmatpush1.msra.mxu0 %v515
        %517 = vmatprep.subr.mxu0 0.0
        %v518 = vand.u32 %v187, 4294901760
        %v519 = vsub.f32 %v187, %v518
        %520 = vmatpush1.msra.mxu0 %v519
        %521 = vmatprep.subr.mxu0 0.0
        %v522 = vand.u32 %v186, 4294901760
        %v523 = vsub.f32 %v186, %v522
        %524 = vmatpush1.msra.mxu0 %v523
        %525 = vmatprep.subr.mxu0 0.0
        %v526 = vand.u32 %v185, 4294901760
        %v527 = vsub.f32 %v185, %v526
        %528 = vmatpush1.msra.mxu0 %v527
        %529 = vmatprep.subr.mxu0 0.0
        %v530 = vand.u32 %v184, 4294901760
        %v531 = vsub.f32 %v184, %v530
        %532 = vmatpush1.msra.mxu0 %v531
        %533 = vmatprep.subr.mxu0 0.0
        %v534 = vand.u32 %v183, 4294901760
        %v535 = vsub.f32 %v183, %v534
        %536 = vmatpush1.msra.mxu0 %v535
        %537 = vmatprep.subr.mxu0 0.0
        %538 = vmatpush2.msra.mxu0 0.0
        %539 = vmatprep.subr.mxu0 0.0
        %540 = vmatpush2.msra.mxu0 0.0
        %541 = vmatprep.subr.mxu0 0.0
        %542 = vmatpush2.msra.mxu0 0.0
        %543 = vmatprep.subr.mxu0 0.0
        %544 = vmatpush2.msra.mxu0 0.0
        %545 = vmatprep.subr.mxu0 0.0
        %546 = vmatpush2.msra.mxu0 0.0
        %547 = vmatprep.subr.mxu0 0.0
        %548 = vmatpush2.msra.mxu0 0.0
        %549 = vmatprep.subr.mxu0 0.0
        %550 = vmatpush2.msra.mxu0 0.0
        %551 = vmatprep.subr.mxu0 0.0
        %552 = vmatpush2.msra.mxu0 0.0
        %553 = vmatprep.subr.mxu0 0.0
        %554 = vmatpush2.msra.mxu0 0.0
        %555 = vmatprep.subr.mxu0 0.0
        %556 = vmatpush2.msra.mxu0 0.0
        %557 = vmatprep.subr.mxu0 0.0
        %558 = vmatpush2.msra.mxu0 0.0
        %559 = vmatprep.subr.mxu0 0.0
        %560 = vmatpush2.msra.mxu0 0.0
        %561 = vmatprep.subr.mxu0 0.0
        %562 = vmatpush2.msra.mxu0 0.0
        %563 = vmatprep.subr.mxu0 0.0
        %564 = vmatpush2.msra.mxu0 0.0
        %565 = vmatprep.subr.mxu0 0.0
        %566 = vmatpush2.msra.mxu0 0.0
        %567 = vmatprep.subr.mxu0 0.0
        %568 = vmatpush2.msra.mxu0 0.0
        %569 = vmatprep.mubr.f32.mxu0 0.0
        %v570 = vand.u32 %v180, 4294901760
        %v571 = vsub.f32 %v180, %v570
        %572 = vmatmul.mubr.f32.gmra.mxu0 %v571
        %v573 = vpop.f32.mrf.mxu0
        %v574 = vadd.f32 %v458, %v573
        %v575 = vpop.f32.mrf.mxu0
        %576 = vmatprep.mubr.f32.mxu0 0.0
        %v577 = vand.u32 %v181, 4294901760
        %v578 = vsub.f32 %v181, %v577
        %579 = vmatmul.mubr.f32.gmra.mxu0 %v578
        %v580 = vpop.f32.mrf.mxu0
        %v581 = vadd.f32 %v464, %v580
        %v582 = vpop.f32.mrf.mxu0
        %583 = vmatprep.mubr.f32.mxu0 0.0
        %v584 = vand.u32 %v182, 4294901760
        %v585 = vsub.f32 %v182, %v584
        %586 = vmatmul.mubr.f32.gmra.mxu0 %v585
        %v587 = vpop.f32.mrf.mxu0
        %v588 = vadd.f32 %v470, %v587
        %v589 = vpop.f32.mrf.mxu0
        %590 = vdwg.mxu0
        %591 = vmatprep.subr.mxu0 0.0
        %v592 = vand.u32 %v198, 4294901760
        %593 = vmatpush1.msra.mxu0 %v592
        %594 = vmatprep.subr.mxu0 0.0
        %v595 = vand.u32 %v197, 4294901760
        %596 = vmatpush1.msra.mxu0 %v595
        %597 = vmatprep.subr.mxu0 0.0
        %v598 = vand.u32 %v196, 4294901760
        %599 = vmatpush1.msra.mxu0 %v598
        %600 = vmatprep.subr.mxu0 0.0
        %v601 = vand.u32 %v195, 4294901760
        %602 = vmatpush1.msra.mxu0 %v601
        %603 = vmatprep.subr.mxu0 0.0
        %v604 = vand.u32 %v194, 4294901760
        %605 = vmatpush1.msra.mxu0 %v604
        %606 = vmatprep.subr.mxu0 0.0
        %v607 = vand.u32 %v193, 4294901760
        %608 = vmatpush1.msra.mxu0 %v607
        %609 = vmatprep.subr.mxu0 0.0
        %v610 = vand.u32 %v192, 4294901760
        %611 = vmatpush1.msra.mxu0 %v610
        %612 = vmatprep.subr.mxu0 0.0
        %v613 = vand.u32 %v191, 4294901760
        %614 = vmatpush1.msra.mxu0 %v613
        %615 = vmatprep.subr.mxu0 0.0
        %v616 = vand.u32 %v190, 4294901760
        %617 = vmatpush1.msra.mxu0 %v616
        %618 = vmatprep.subr.mxu0 0.0
        %v619 = vand.u32 %v189, 4294901760
        %620 = vmatpush1.msra.mxu0 %v619
        %621 = vmatprep.subr.mxu0 0.0
        %v622 = vand.u32 %v188, 4294901760
        %623 = vmatpush1.msra.mxu0 %v622
        %624 = vmatprep.subr.mxu0 0.0
        %v625 = vand.u32 %v187, 4294901760
        %626 = vmatpush1.msra.mxu0 %v625
        %627 = vmatprep.subr.mxu0 0.0
        %v628 = vand.u32 %v186, 4294901760
        %629 = vmatpush1.msra.mxu0 %v628
        %630 = vmatprep.subr.mxu0 0.0
        %v631 = vand.u32 %v185, 4294901760
        %632 = vmatpush1.msra.mxu0 %v631
        %633 = vmatprep.subr.mxu0 0.0
        %v634 = vand.u32 %v184, 4294901760
        %635 = vmatpush1.msra.mxu0 %v634
        %636 = vmatprep.subr.mxu0 0.0
        %v637 = vand.u32 %v183, 4294901760
        %638 = vmatpush1.msra.mxu0 %v637
        %639 = vmatprep.subr.mxu0 0.0
        %640 = vmatpush2.msra.mxu0 0.0
        %641 = vmatprep.subr.mxu0 0.0
        %642 = vmatpush2.msra.mxu0 0.0
        %643 = vmatprep.subr.mxu0 0.0
        %644 = vmatpush2.msra.mxu0 0.0
        %645 = vmatprep.subr.mxu0 0.0
        %646 = vmatpush2.msra.mxu0 0.0
        %647 = vmatprep.subr.mxu0 0.0
        %648 = vmatpush2.msra.mxu0 0.0
        %649 = vmatprep.subr.mxu0 0.0
        %650 = vmatpush2.msra.mxu0 0.0
        %651 = vmatprep.subr.mxu0 0.0
        %652 = vmatpush2.msra.mxu0 0.0
        %653 = vmatprep.subr.mxu0 0.0
        %654 = vmatpush2.msra.mxu0 0.0
        %655 = vmatprep.subr.mxu0 0.0
        %656 = vmatpush2.msra.mxu0 0.0
        %657 = vmatprep.subr.mxu0 0.0
        %658 = vmatpush2.msra.mxu0 0.0
        %659 = vmatprep.subr.mxu0 0.0
        %660 = vmatpush2.msra.mxu0 0.0
        %661 = vmatprep.subr.mxu0 0.0
        %662 = vmatpush2.msra.mxu0 0.0
        %663 = vmatprep.subr.mxu0 0.0
        %664 = vmatpush2.msra.mxu0 0.0
        %665 = vmatprep.subr.mxu0 0.0
        %666 = vmatpush2.msra.mxu0 0.0
        %667 = vmatprep.subr.mxu0 0.0
        %668 = vmatpush2.msra.mxu0 0.0
        %669 = vmatprep.subr.mxu0 0.0
        %670 = vmatpush2.msra.mxu0 0.0
        %671 = vmatprep.mubr.f32.mxu0 0.0
        %v672 = vand.u32 %v180, 4294901760
        %v673 = vsub.f32 %v180, %v672
        %v674 = vand.u32 %v673, 4294901760
        %675 = vmatmul.mubr.f32.gmra.mxu0 %v674
        %v676 = vpop.f32.mrf.mxu0
        %v677 = vadd.f32 %v574, %v676
        %v678 = vpop.f32.mrf.mxu0
        %679 = vmatprep.mubr.f32.mxu0 0.0
        %v680 = vand.u32 %v181, 4294901760
        %v681 = vsub.f32 %v181, %v680
        %v682 = vand.u32 %v681, 4294901760
        %683 = vmatmul.mubr.f32.gmra.mxu0 %v682
        %v684 = vpop.f32.mrf.mxu0
        %v685 = vadd.f32 %v581, %v684
        %v686 = vpop.f32.mrf.mxu0
        %687 = vmatprep.mubr.f32.mxu0 0.0
        %v688 = vand.u32 %v182, 4294901760
        %v689 = vsub.f32 %v182, %v688
        %v690 = vand.u32 %v689, 4294901760
        %691 = vmatmul.mubr.f32.gmra.mxu0 %v690
        %v692 = vpop.f32.mrf.mxu0
        %v693 = vadd.f32 %v588, %v692
        %v694 = vpop.f32.mrf.mxu0
        %695 = vdwg.mxu0
        %696 = vmatprep.subr.mxu0 0.0
        %v697 = vand.u32 %v198, 4294901760
        %v698 = vsub.f32 %v198, %v697
        %v699 = vand.u32 %v698, 4294901760
        %700 = vmatpush1.msra.mxu0 %v699
        %701 = vmatprep.subr.mxu0 0.0
        %v702 = vand.u32 %v197, 4294901760
        %v703 = vsub.f32 %v197, %v702
        %v704 = vand.u32 %v703, 4294901760
        %705 = vmatpush1.msra.mxu0 %v704
        %706 = vmatprep.subr.mxu0 0.0
        %v707 = vand.u32 %v196, 4294901760
        %v708 = vsub.f32 %v196, %v707
        %v709 = vand.u32 %v708, 4294901760
        %710 = vmatpush1.msra.mxu0 %v709
        %711 = vmatprep.subr.mxu0 0.0
        %v712 = vand.u32 %v195, 4294901760
        %v713 = vsub.f32 %v195, %v712
        %v714 = vand.u32 %v713, 4294901760
        %715 = vmatpush1.msra.mxu0 %v714
        %716 = vmatprep.subr.mxu0 0.0
        %v717 = vand.u32 %v194, 4294901760
        %v718 = vsub.f32 %v194, %v717
        %v719 = vand.u32 %v718, 4294901760
        %720 = vmatpush1.msra.mxu0 %v719
        %721 = vmatprep.subr.mxu0 0.0
        %v722 = vand.u32 %v193, 4294901760
        %v723 = vsub.f32 %v193, %v722
        %v724 = vand.u32 %v723, 4294901760
        %725 = vmatpush1.msra.mxu0 %v724
        %726 = vmatprep.subr.mxu0 0.0
        %v727 = vand.u32 %v192, 4294901760
        %v728 = vsub.f32 %v192, %v727
        %v729 = vand.u32 %v728, 4294901760
        %730 = vmatpush1.msra.mxu0 %v729
        %731 = vmatprep.subr.mxu0 0.0
        %v732 = vand.u32 %v191, 4294901760
        %v733 = vsub.f32 %v191, %v732
        %v734 = vand.u32 %v733, 4294901760
        %735 = vmatpush1.msra.mxu0 %v734
        %736 = vmatprep.subr.mxu0 0.0
        %v737 = vand.u32 %v190, 4294901760
        %v738 = vsub.f32 %v190, %v737
        %v739 = vand.u32 %v738, 4294901760
        %740 = vmatpush1.msra.mxu0 %v739
        %741 = vmatprep.subr.mxu0 0.0
        %v742 = vand.u32 %v189, 4294901760
        %v743 = vsub.f32 %v189, %v742
        %v744 = vand.u32 %v743, 4294901760
        %745 = vmatpush1.msra.mxu0 %v744
        %746 = vmatprep.subr.mxu0 0.0
        %v747 = vand.u32 %v188, 4294901760
        %v748 = vsub.f32 %v188, %v747
        %v749 = vand.u32 %v748, 4294901760
        %750 = vmatpush1.msra.mxu0 %v749
        %751 = vmatprep.subr.mxu0 0.0
        %v752 = vand.u32 %v187, 4294901760
        %v753 = vsub.f32 %v187, %v752
        %v754 = vand.u32 %v753, 4294901760
        %755 = vmatpush1.msra.mxu0 %v754
        %756 = vmatprep.subr.mxu0 0.0
        %v757 = vand.u32 %v186, 4294901760
        %v758 = vsub.f32 %v186, %v757
        %v759 = vand.u32 %v758, 4294901760
        %760 = vmatpush1.msra.mxu0 %v759
        %761 = vmatprep.subr.mxu0 0.0
        %v762 = vand.u32 %v185, 4294901760
        %v763 = vsub.f32 %v185, %v762
        %v764 = vand.u32 %v763, 4294901760
        %765 = vmatpush1.msra.mxu0 %v764
        %766 = vmatprep.subr.mxu0 0.0
        %v767 = vand.u32 %v184, 4294901760
        %v768 = vsub.f32 %v184, %v767
        %v769 = vand.u32 %v768, 4294901760
        %770 = vmatpush1.msra.mxu0 %v769
        %771 = vmatprep.subr.mxu0 0.0
        %v772 = vand.u32 %v183, 4294901760
        %v773 = vsub.f32 %v183, %v772
        %v774 = vand.u32 %v773, 4294901760
        %775 = vmatpush1.msra.mxu0 %v774
        %776 = vmatprep.subr.mxu0 0.0
        %777 = vmatpush2.msra.mxu0 0.0
        %778 = vmatprep.subr.mxu0 0.0
        %779 = vmatpush2.msra.mxu0 0.0
        %780 = vmatprep.subr.mxu0 0.0
        %781 = vmatpush2.msra.mxu0 0.0
        %782 = vmatprep.subr.mxu0 0.0
        %783 = vmatpush2.msra.mxu0 0.0
        %784 = vmatprep.subr.mxu0 0.0
        %785 = vmatpush2.msra.mxu0 0.0
        %786 = vmatprep.subr.mxu0 0.0
        %787 = vmatpush2.msra.mxu0 0.0
        %788 = vmatprep.subr.mxu0 0.0
        %789 = vmatpush2.msra.mxu0 0.0
        %790 = vmatprep.subr.mxu0 0.0
        %791 = vmatpush2.msra.mxu0 0.0
        %792 = vmatprep.subr.mxu0 0.0
        %793 = vmatpush2.msra.mxu0 0.0
        %794 = vmatprep.subr.mxu0 0.0
        %795 = vmatpush2.msra.mxu0 0.0
        %796 = vmatprep.subr.mxu0 0.0
        %797 = vmatpush2.msra.mxu0 0.0
        %798 = vmatprep.subr.mxu0 0.0
        %799 = vmatpush2.msra.mxu0 0.0
        %800 = vmatprep.subr.mxu0 0.0
        %801 = vmatpush2.msra.mxu0 0.0
        %802 = vmatprep.subr.mxu0 0.0
        %803 = vmatpush2.msra.mxu0 0.0
        %804 = vmatprep.subr.mxu0 0.0
        %805 = vmatpush2.msra.mxu0 0.0
        %806 = vmatprep.subr.mxu0 0.0
        %807 = vmatpush2.msra.mxu0 0.0
        %808 = vmatprep.mubr.f32.mxu0 0.0
        %v809 = vand.u32 %v180, 4294901760
        %810 = vmatmul.mubr.f32.gmra.mxu0 %v809
        %v811 = vpop.f32.mrf.mxu0
        %v812 = vadd.f32 %v677, %v811
        %v813 = vpop.f32.mrf.mxu0
        %814 = vmatprep.mubr.f32.mxu0 0.0
        %v815 = vand.u32 %v181, 4294901760
        %816 = vmatmul.mubr.f32.gmra.mxu0 %v815
        %v817 = vpop.f32.mrf.mxu0
        %v818 = vadd.f32 %v685, %v817
        %v819 = vpop.f32.mrf.mxu0
        %820 = vmatprep.mubr.f32.mxu0 0.0
        %v821 = vand.u32 %v182, 4294901760
        %822 = vmatmul.mubr.f32.gmra.mxu0 %v821
        %v823 = vpop.f32.mrf.mxu0
        %v824 = vadd.f32 %v693, %v823
        %v825 = vpop.f32.mrf.mxu0
        %826 = vdwg.mxu0
        %827 = vmatprep.subr.mxu0 0.0
        %v828 = vand.u32 %v198, 4294901760
        %829 = vmatpush1.msra.mxu0 %v828
        %830 = vmatprep.subr.mxu0 0.0
        %v831 = vand.u32 %v197, 4294901760
        %832 = vmatpush1.msra.mxu0 %v831
        %833 = vmatprep.subr.mxu0 0.0
        %v834 = vand.u32 %v196, 4294901760
        %835 = vmatpush1.msra.mxu0 %v834
        %836 = vmatprep.subr.mxu0 0.0
        %v837 = vand.u32 %v195, 4294901760
        %838 = vmatpush1.msra.mxu0 %v837
        %839 = vmatprep.subr.mxu0 0.0
        %v840 = vand.u32 %v194, 4294901760
        %841 = vmatpush1.msra.mxu0 %v840
        %842 = vmatprep.subr.mxu0 0.0
        %v843 = vand.u32 %v193, 4294901760
        %844 = vmatpush1.msra.mxu0 %v843
        %845 = vmatprep.subr.mxu0 0.0
        %v846 = vand.u32 %v192, 4294901760
        %847 = vmatpush1.msra.mxu0 %v846
        %848 = vmatprep.subr.mxu0 0.0
        %v849 = vand.u32 %v191, 4294901760
        %850 = vmatpush1.msra.mxu0 %v849
        %851 = vmatprep.subr.mxu0 0.0
        %v852 = vand.u32 %v190, 4294901760
        %853 = vmatpush1.msra.mxu0 %v852
        %854 = vmatprep.subr.mxu0 0.0
        %v855 = vand.u32 %v189, 4294901760
        %856 = vmatpush1.msra.mxu0 %v855
        %857 = vmatprep.subr.mxu0 0.0
        %v858 = vand.u32 %v188, 4294901760
        %859 = vmatpush1.msra.mxu0 %v858
        %860 = vmatprep.subr.mxu0 0.0
        %v861 = vand.u32 %v187, 4294901760
        %862 = vmatpush1.msra.mxu0 %v861
        %863 = vmatprep.subr.mxu0 0.0
        %v864 = vand.u32 %v186, 4294901760
        %865 = vmatpush1.msra.mxu0 %v864
        %866 = vmatprep.subr.mxu0 0.0
        %v867 = vand.u32 %v185, 4294901760
        %868 = vmatpush1.msra.mxu0 %v867
        %869 = vmatprep.subr.mxu0 0.0
        %v870 = vand.u32 %v184, 4294901760
        %871 = vmatpush1.msra.mxu0 %v870
        %872 = vmatprep.subr.mxu0 0.0
        %v873 = vand.u32 %v183, 4294901760
        %874 = vmatpush1.msra.mxu0 %v873
        %875 = vmatprep.subr.mxu0 0.0
        %876 = vmatpush2.msra.mxu0 0.0
        %877 = vmatprep.subr.mxu0 0.0
        %878 = vmatpush2.msra.mxu0 0.0
        %879 = vmatprep.subr.mxu0 0.0
        %880 = vmatpush2.msra.mxu0 0.0
        %881 = vmatprep.subr.mxu0 0.0
        %882 = vmatpush2.msra.mxu0 0.0
        %883 = vmatprep.subr.mxu0 0.0
        %884 = vmatpush2.msra.mxu0 0.0
        %885 = vmatprep.subr.mxu0 0.0
        %886 = vmatpush2.msra.mxu0 0.0
        %887 = vmatprep.subr.mxu0 0.0
        %888 = vmatpush2.msra.mxu0 0.0
        %889 = vmatprep.subr.mxu0 0.0
        %890 = vmatpush2.msra.mxu0 0.0
        %891 = vmatprep.subr.mxu0 0.0
        %892 = vmatpush2.msra.mxu0 0.0
        %893 = vmatprep.subr.mxu0 0.0
        %894 = vmatpush2.msra.mxu0 0.0
        %895 = vmatprep.subr.mxu0 0.0
        %896 = vmatpush2.msra.mxu0 0.0
        %897 = vmatprep.subr.mxu0 0.0
        %898 = vmatpush2.msra.mxu0 0.0
        %899 = vmatprep.subr.mxu0 0.0
        %900 = vmatpush2.msra.mxu0 0.0
        %901 = vmatprep.subr.mxu0 0.0
        %902 = vmatpush2.msra.mxu0 0.0
        %903 = vmatprep.subr.mxu0 0.0
        %904 = vmatpush2.msra.mxu0 0.0
        %905 = vmatprep.subr.mxu0 0.0
        %906 = vmatpush2.msra.mxu0 0.0
        %907 = vmatprep.mubr.f32.mxu0 0.0
        %v908 = vand.u32 %v180, 4294901760
        %909 = vmatmul.mubr.f32.gmra.mxu0 %v908
        %v910 = vpop.f32.mrf.mxu0
        %v911 = vadd.f32 %v812, %v910
        %v912 = vpop.f32.mrf.mxu0
        %913 = vmatprep.mubr.f32.mxu0 0.0
        %v914 = vand.u32 %v181, 4294901760
        %915 = vmatmul.mubr.f32.gmra.mxu0 %v914
        %v916 = vpop.f32.mrf.mxu0
        %v917 = vadd.f32 %v818, %v916
        %v918 = vpop.f32.mrf.mxu0
        %919 = vmatprep.mubr.f32.mxu0 0.0
        %v920 = vand.u32 %v182, 4294901760
        %921 = vmatmul.mubr.f32.gmra.mxu0 %v920
        %v922 = vpop.f32.mrf.mxu0
        %v923 = vadd.f32 %v824, %v922
        %v924 = vpop.f32.mrf.mxu0
        %925 = vdwg.mxu0
        %926 = vst [vmem:[%s152] sm:$0xff] %v911
        %927 = vst [vmem:[%s152 + $0x8] sm:$0xff] %v917
        %928 = vst [vmem:[%s152 + $0x10] sm:$0xff] %v923
        %s929 = sand.u32 %s72, 1
        %s930 = scalar_lea.sflag [#allocation4], %s929
        %s931 = sand.u32 %s72, 1
        %s932 = smul.addr %s931, 24
        %s933 = scalar_lea.vmem [#allocation5], %s932
        // Predicated region
        $region33: #{tpu_custom_call.1} parent=27 // pred_check
          %p934 = pneg %p82
        $region34: #{tpu_custom_call.1} parent=27 // pred_check_branch
          %936 = sbr.rel (%p934) target = $region36
        $region35: #{tpu_custom_call.1} parent=27 // pred_region
          %s937 = smul.u32 3, %s17
          %s939 = ssub.s32 384, 384
          %940 = vsyncadd %s930, %s939
          %s941 = smul.addr %s937, 128
          %s942 = scalar_lea.hbm %s2, %s941
          %s943 = sshll.u32 %s933, 4
          %s944 = int_to_ptr.vmem [resolvable:$true] %s943
          %949 = dma.vmem_to_hbm [thread:$0]  %s944, 384, %s942, %s930, 128, 128, 8
        $region36: #{tpu_custom_call.1} parent=27 // pred_fallthru
          _
      $region28: #{tpu_custom_call.1} parent=5 // pred_fallthru
        _
      %p950 = scmp.le.s32.totalorder 2, %s12
      // Predicated region
      $region37: #{tpu_custom_call.1} parent=5 // pred_check
        %p951 = pneg %p950
      $region38: #{tpu_custom_call.1} parent=5 // pred_check_branch
        %953 = sbr.rel (%p951) target = $region40
      $region39: #{tpu_custom_call.1} parent=5 // pred_region
        %s954 = ssub.s32 %s12, 2
        // Predicated region
        $region41: #{tpu_custom_call.1} parent=39 // pred_check
          %p955 = pneg %p88
        $region42: #{tpu_custom_call.1} parent=39 // pred_check_branch
          %957 = sbr.rel (%p955) target = $region44
        $region43: #{tpu_custom_call.1} parent=39 // pred_region
          %s958 = sand.u32 %s73, 1
          %s959 = scalar_lea.sflag [#allocation4], %s958
          %s960 = sand.u32 %s73, 1
          %s961 = smul.addr %s960, 24
          %s962 = scalar_lea.vmem [#allocation5], %s961
          %963 = dma.done %s959, 384
        $region44: #{tpu_custom_call.1} parent=39 // pred_fallthru
          _
      $region40: #{tpu_custom_call.1} parent=5 // pred_fallthru
        _
    $region6: #{tpu_custom_call.1} parent=1 // loop_footer
      %s16 = sadd.s32 1, %s12
    $region7: #{tpu_custom_call.1} parent=1 // loop_footer_branch
      %11 = sbr.rel target = $region3
    $region8: #{tpu_custom_call.1} parent=1 // loop_exit
      _
    %964 = vsyncpa [#allocation3], 1
    %s965 = scalar_lea.sflag [#allocation3], 1
    %966 = vsyncpa %s965, 1
    %967 = vsyncpa [#allocation4], 1
    %s968 = scalar_lea.sflag [#allocation4], 1
    %969 = vsyncpa %s968, 1

</llo_original>
